<compile_context>
chip_gen: v7x
topology: tpu7x:2x2x1
jax: 0.10.0
libtpu: 0.0.40
codegen_flags: <defaults>
</compile_context>

<pallas_src>
import functools

import jax
import jax.numpy as jnp
from jax.experimental import pallas as pl
from jax.experimental.pallas import tpu as pltpu


_FLIPS = ((False, False), (False, True), (True, False), (True, True))


def _mdlstm_wavefront_kernel(xg_ref, mask_ref, wrec_ref, out_ref,
                             h_state, c_state, *, B, C, HB):
    """One anti-diagonal step of the 4-direction 2D LSTM.

    Layout: sublanes = (gate, direction, channel), lanes = flattened (row, batch).

    xg_ref  : (1, 20C, HB)   precomputed x @ Wx + bias for this diagonal
    mask_ref: (1, 1, HB)     1.0 on in-image lanes of this diagonal, else 0.0
    wrec_ref: (20C, 8C)      block-diagonal recurrent weights ([top | left] cols)
    out_ref : (1, 4C, HB)    hidden states of this diagonal
    h_state, c_state: (4C, (H+1)*B) scratch carrying the previous diagonal.
        Lanes [0:B) are a permanent zero boundary (top neighbour of image row 0);
        lane B + i*B + b holds pixel (i, t-1-i) for batch b.
    """
    @pl.when(pl.program_id(0) == 0)
    def _():
        h_state[...] = jnp.zeros_like(h_state)
        c_state[...] = jnp.zeros_like(c_state)

    C4 = 4 * C

    # Neighbours of this diagonal are two lane-shifted windows of the single
    # previous-diagonal buffer (shift by one image row == shift by B lanes).
    h_top = h_state[:, 0:HB]            # (4C, HB)
    h_left = h_state[:, B:B + HB]
    c_top = c_state[:, 0:HB]
    c_left = c_state[:, B:B + HB]

    # One fused recurrent matmul for both neighbours and all 4 directions.
    hcat = jnp.concatenate([h_top, h_left], axis=0)              # (8C, HB)
    gates = xg_ref[0] + jnp.dot(wrec_ref[...], hcat,
                                preferred_element_type=jnp.float32)  # (20C, HB)

    sg = jax.nn.sigmoid(gates[:4 * C4, :])   # one EUP pass over the 4 sigmoid gates
    gg = jnp.tanh(gates[4 * C4:, :])         # cell candidate
    ig = sg[0 * C4:1 * C4]                   # input gate
    ft = sg[1 * C4:2 * C4]                   # forget gate (top)
    fl = sg[2 * C4:3 * C4]                   # forget gate (left)
    og = sg[3 * C4:4 * C4]                   # output gate

    mask = mask_ref[0]                                            # (1, HB)
    c_new = (ig * gg + ft * c_top + fl * c_left) * mask
    h_new = og * jnp.tanh(c_new)             # c_new already zeroed off-image

    out_ref[0] = h_new
    h_state[:, B:B + HB] = h_new
    c_state[:, B:B + HB] = c_new


def _mdlstm_scan(xg, mask, wrec, H, W, B, C):
    T = H + W - 1
    HB = H * B
    G20 = 20 * C
    C4 = 4 * C
    C8 = 8 * C

    # Explicit scoped-VMEM sizing: per-step double-buffered blocks + residents.
    blk_bytes = 4 * ((G20 + 1 + C4) * HB)
    resident = 4 * (G20 * C8 + 2 * C4 * (H + 1) * B)
    vmem_limit = int(min(max(3 * (2 * blk_bytes + resident) + (4 << 20), 8 << 20),
                         32 << 20))

    kernel = functools.partial(_mdlstm_wavefront_kernel, B=B, C=C, HB=HB)
    return pl.pallas_call(
        kernel,
        out_shape=jax.ShapeDtypeStruct((T, C4, HB), jnp.float32),
        grid_spec=pltpu.PrefetchScalarGridSpec(
            num_scalar_prefetch=0,
            grid=(T,),
            in_specs=[
                pl.BlockSpec((1, G20, HB), lambda t: (t, 0, 0)),   # xg[t]
                pl.BlockSpec((1, 1, HB), lambda t: (t, 0, 0)),     # mask[t]
                pl.BlockSpec((G20, C8), lambda t: (0, 0)),         # wrec (resident)
            ],
            out_specs=pl.BlockSpec((1, C4, HB), lambda t: (t, 0, 0)),
            scratch_shapes=[
                pltpu.VMEM((C4, (H + 1) * B), jnp.float32),        # h state
                pltpu.VMEM((C4, (H + 1) * B), jnp.float32),        # c state
            ]),
        compiler_params=pltpu.CompilerParams(
            dimension_semantics=("arbitrary",),
            vmem_limit_bytes=vmem_limit),
    )(xg, mask, wrec)


def mdlstm_layer(x_bhwc, params):
    """One MDLSTM block.  x_bhwc: (B, H, W, Cin) -> (B, 4, H, W, C)."""
    wx, wht, whl, b = params          # wx (4,Cin,5C), wht/whl (4,C,5C), b (4,5C)
    Bsz, H, W, Cin = x_bhwc.shape
    C = wht.shape[1]
    T = H + W - 1
    HB = H * Bsz
    G = 5 * C

    # 4 direction-flipped copies (scan origins TL, TR, BL, BR).
    xs = []
    for fh, fw in _FLIPS:
        xd = x_bhwc
        if fh:
            xd = xd[:, ::-1]
        if fw:
            xd = xd[:, :, ::-1]
        xs.append(xd)
    x4 = jnp.stack(xs, axis=0)                                    # (4, B, H, W, Cin)

    # Non-recurrent gate contribution in image coordinates (hoisted out of scan).
    xg_img = jnp.einsum('dbhwk,dkn->dbhwn', x4, wx) + b[:, None, None, None, :]
    xg_img = jnp.transpose(xg_img, (0, 2, 3, 1, 4))               # (4, H, W, B, 5C)

    # Anti-diagonal skew via pad/reshape (no gather): sk[d,i,t] = img[d,i,t-i].
    xg_p = jnp.pad(xg_img, ((0, 0), (0, 0), (0, H), (0, 0), (0, 0)))   # (4,H,W+H,B,5C)
    xg_f = xg_p.reshape(4, H * (W + H), Bsz, G)[:, :H * T]
    xg_sk = xg_f.reshape(4, H, T, Bsz, G)                         # (4, H, T, B, 5C)

    # -> (T, 20C, HB): sublane = g*4C + d*C + c (gate-major), lane = i*B + b.
    xg_sk = xg_sk.reshape(4, H, T, Bsz, 5, C)
    xg_sk = jnp.transpose(xg_sk, (2, 4, 0, 5, 1, 3))              # (T, 5, 4, C, H, B)
    xg = xg_sk.reshape(T, 20 * C, HB)

    # Block-diagonal recurrent weight (20C, 8C), gate-major rows:
    # row = g*4C + d*C + n ; cols [0:4C)=top neighbour (d*C+k), [4C:8C)=left.
    wht_t = jnp.transpose(wht.reshape(4, C, 5, C), (2, 0, 3, 1))  # (5, 4, Cout, Cin)
    whl_t = jnp.transpose(whl.reshape(4, C, 5, C), (2, 0, 3, 1))
    eye_d = jnp.eye(4, dtype=wht.dtype)
    w_top = jnp.einsum('gdnk,de->gdnek', wht_t, eye_d).reshape(20 * C, 4 * C)
    w_left = jnp.einsum('gdnk,de->gdnek', whl_t, eye_d).reshape(20 * C, 4 * C)
    wrec = jnp.concatenate([w_top, w_left], axis=1)               # (20C, 8C)

    # Wavefront validity mask (off-image lanes per diagonal), computed once.
    tij = jnp.arange(T)[:, None] - jnp.arange(H)[None, :]         # (T, H)
    m = ((tij >= 0) & (tij < W)).astype(jnp.float32)
    mask = jnp.repeat(m, Bsz, axis=1).reshape(T, 1, HB)

    out_sk = _mdlstm_scan(xg, mask, wrec, H, W, Bsz, C)           # (T, 4C, HB)

    # Un-skew via pad/reshape: img[d,i,j] = sk[d,i,i+j].
    sk = out_sk.reshape(T, 4, C, H, Bsz)
    sk = jnp.transpose(sk, (1, 3, 0, 4, 2))                       # (4, H, T, B, C)
    sk = sk.reshape(4, H * T, Bsz, C)
    sk = jnp.pad(sk, ((0, 0), (0, H), (0, 0), (0, 0)))
    sk = sk.reshape(4, H, T + 1, Bsz, C)[:, :, :W]                # (4, H, W, B, C)
    out4 = jnp.transpose(sk, (0, 3, 1, 2, 4))                     # (4, B, H, W, C)

    # Un-flip each direction back to the original image orientation.
    outs = []
    for d, (fh, fw) in enumerate(_FLIPS):
        od = out4[d]
        if fh:
            od = od[:, ::-1]
        if fw:
            od = od[:, :, ::-1]
        outs.append(od)
    return jnp.stack(outs, axis=1)                                # (B, 4, H, W, C)


def init_params(key, feature_maps_multiplicity, nb_layers, nb_classes):
    """Deterministic synthetic weights, shapes as implied by MultiMdlstm.__init__."""
    params = []
    in_channels = 1
    for i in range(nb_layers):
        hidden = (i + 1) * feature_maps_multiplicity
        if i == nb_layers - 1:
            hidden = nb_classes
        k = jax.random.fold_in(key, i)
        k1, k2, k3, k4 = jax.random.split(k, 4)
        scale = 0.1
        wx = scale * jax.random.normal(k1, (4, in_channels, 5 * hidden), jnp.float32)
        wht = scale * jax.random.normal(k2, (4, hidden, 5 * hidden), jnp.float32)
        whl = scale * jax.random.normal(k3, (4, hidden, 5 * hidden), jnp.float32)
        b = scale * jax.random.normal(k4, (4, 5 * hidden), jnp.float32)
        params.append((wx, wht, whl, b))
        in_channels = hidden
    return params


def multi_mdlstm_forward(x_nchw, params):
    """Matches MultiMdlstm.forward: stack of MDLSTM blocks, direction-average
    after each block (x.sum(1) / 4), then sum over height at the end.

    x_nchw: (B, 1, H, W)  ->  (B, nb_classes, W)
    """
    x = jnp.transpose(x_nchw, (0, 2, 3, 1))          # (B, H, W, 1)
    for p in params:
        x4 = mdlstm_layer(x, p)                      # (B, 4, H, W, C)
        x = jnp.sum(x4, axis=1) / 4.0                # direction average
    out = jnp.sum(x, axis=1)                         # sum over height -> (B, W, C)
    return jnp.transpose(out, (0, 2, 1))             # (B, nb_classes, W)


# ---------------------------------------------------------------------------
# Plain-JAX per-pixel reference (structurally independent of the wavefront
# kernel) used only for validation in __main__.
# ---------------------------------------------------------------------------
def _mdlstm_cell_ref(xij, h_top, h_left, c_top, c_left, wx, wht, whl, b):
    C = wht.shape[0]
    g = xij @ wx + h_top @ wht + h_left @ whl + b
    ig = jax.nn.sigmoid(g[:, 0 * C:1 * C])
    ft = jax.nn.sigmoid(g[:, 1 * C:2 * C])
    fl = jax.nn.sigmoid(g[:, 2 * C:3 * C])
    og = jax.nn.sigmoid(g[:, 3 * C:4 * C])
    gg = jnp.tanh(g[:, 4 * C:5 * C])
    c = ig * gg + ft * c_top + fl * c_left
    h = og * jnp.tanh(c)
    return h, c


def _mdlstm_layer_ref(x_bhwc, params):
    wx, wht, whl, b = params
    Bsz, H, W, _ = x_bhwc.shape
    C = wht.shape[1]
    outs = []
    for d, (fh, fw) in enumerate(_FLIPS):
        xd = x_bhwc
        if fh:
            xd = xd[:, ::-1]
        if fw:
            xd = xd[:, :, ::-1]
        zero = jnp.zeros((Bsz, C), jnp.float32)
        h = [[zero] * W for _ in range(H)]
        c = [[zero] * W for _ in range(H)]
        for i in range(H):
            for j in range(W):
                h_top = h[i - 1][j] if i > 0 else zero
                h_left = h[i][j - 1] if j > 0 else zero
                c_top = c[i - 1][j] if i > 0 else zero
                c_left = c[i][j - 1] if j > 0 else zero
                h[i][j], c[i][j] = _mdlstm_cell_ref(
                    xd[:, i, j], h_top, h_left, c_top, c_left,
                    wx[d], wht[d], whl[d], b[d])
        hd = jnp.stack([jnp.stack(h[i], axis=1) for i in range(H)], axis=1)
        if fh:
            hd = hd[:, ::-1]
        if fw:
            hd = hd[:, :, ::-1]
        outs.append(hd)
    return jnp.stack(outs, axis=1)


def multi_mdlstm_forward_ref(x_nchw, params):
    x = jnp.transpose(x_nchw, (0, 2, 3, 1))
    for p in params:
        x = jnp.sum(_mdlstm_layer_ref(x, p), axis=1) / 4.0
    out = jnp.sum(x, axis=1)
    return jnp.transpose(out, (0, 2, 1))


if __name__ == "__main__":
    key = jax.random.PRNGKey(0)
    B, H, W = 2, 8, 8
    nb_layers = 3
    feature_maps_multiplicity = 4
    nb_classes = 8

    params = init_params(key, feature_maps_multiplicity, nb_layers, nb_classes)
    x = jax.random.normal(jax.random.fold_in(key, 999), (B, 1, H, W), jnp.float32)

    fwd = jax.jit(multi_mdlstm_forward)
    out = jax.block_until_ready(fwd(x, params))
    assert out.shape == (B, nb_classes, W), out.shape
    assert bool(jnp.all(jnp.isfinite(out)))

    # Validate the wavefront Pallas kernel against the per-pixel plain-JAX
    # reference (loose tolerance covers MXU-vs-XLA f32 matmul precision).
    ref = jax.block_until_ready(multi_mdlstm_forward_ref(x, params))
    max_err = float(jnp.max(jnp.abs(out - ref)))
    assert max_err < 3e-2, f"mismatch vs reference: max abs err = {max_err}"

    print("KERNEL_OK")
</pallas_src>

<mosaic_0001>
module attributes {stable_mosaic.version = 11 : i64} {
  func.func @_mdlstm_wavefront_kernel(%arg0: i32, %arg1: memref<1x80x16xf32, #tpu.memory_space<vmem>>, %arg2: memref<1x1x16xf32, #tpu.memory_space<vmem>>, %arg3: memref<80x32xf32, #tpu.memory_space<vmem>>, %arg4: memref<1x16x16xf32, #tpu.memory_space<vmem>>, %arg5: memref<16x18xf32, #tpu.memory_space<vmem>>, %arg6: memref<16x18xf32, #tpu.memory_space<vmem>>) attributes {dimension_semantics = [#tpu.dimension_semantics<arbitrary>], iteration_bounds = array<i64: 15>, scalar_prefetch = 0 : i64, scratch_operands = 2 : i64, tpu.core_type = #tpu.core_type<tc>, window_params = [{transform_indices = @transform_0, window_bounds = array<i64: 1, 80, 16>}, {transform_indices = @transform_1, window_bounds = array<i64: 1, 1, 16>}, {pipeline_mode = #tpu.pipeline_mode<synchronous>, transform_indices = @transform_2, window_bounds = array<i64: 80, 32>}, {transform_indices = @transform_3, window_bounds = array<i64: 1, 16, 16>}]} {
    %c0_i32 = arith.constant 0 : i32
    %0 = arith.cmpi eq, %arg0, %c0_i32 : i32
    %1 = arith.extui %0 : i1 to i32
    %c0_i32_0 = arith.constant 0 : i32
    %2 = arith.cmpi ne, %1, %c0_i32_0 : i32
    scf.if %2 {
      %cst_23 = arith.constant 0.000000e+00 : f32
      %41 = vector.broadcast %cst_23 : f32 to vector<16x18xf32>
      %c0_24 = arith.constant 0 : index
      %c0_25 = arith.constant 0 : index
      %42 = vector.load %arg5[%c0_24, %c0_25] : memref<16x18xf32, #tpu.memory_space<vmem>>, vector<16x18xf32>
      tpu.vector_store %arg5[%c0_24, %c0_25], %41 {strides = array<i32>} : memref<16x18xf32, #tpu.memory_space<vmem>>, vector<16x18xf32>,
      %cst_26 = arith.constant 0.000000e+00 : f32
      %43 = vector.broadcast %cst_26 : f32 to vector<16x18xf32>
      %c0_27 = arith.constant 0 : index
      %c0_28 = arith.constant 0 : index
      %44 = vector.load %arg6[%c0_27, %c0_28] : memref<16x18xf32, #tpu.memory_space<vmem>>, vector<16x18xf32>
      tpu.vector_store %arg6[%c0_27, %c0_28], %43 {strides = array<i32>} : memref<16x18xf32, #tpu.memory_space<vmem>>, vector<16x18xf32>,
    } else {
    }
    %c0 = arith.constant 0 : index
    %c0_1 = arith.constant 0 : index
    %3 = vector.load %arg5[%c0, %c0_1] : memref<16x18xf32, #tpu.memory_space<vmem>>, vector<16x16xf32>
    %c0_2 = arith.constant 0 : index
    %c2 = arith.constant 2 : index
    %4 = vector.load %arg5[%c0_2, %c2] : memref<16x18xf32, #tpu.memory_space<vmem>>, vector<16x16xf32>
    %c0_3 = arith.constant 0 : index
    %c0_4 = arith.constant 0 : index
    %5 = vector.load %arg6[%c0_3, %c0_4] : memref<16x18xf32, #tpu.memory_space<vmem>>, vector<16x16xf32>
    %c0_5 = arith.constant 0 : index
    %c2_6 = arith.constant 2 : index
    %6 = vector.load %arg6[%c0_5, %c2_6] : memref<16x18xf32, #tpu.memory_space<vmem>>, vector<16x16xf32>
    %7 = tpu.concatenate %3, %4 in 0 : vector<16x16xf32>, vector<16x16xf32> -> vector<32x16xf32>
    %c0_7 = arith.constant 0 : index
    %c0_8 = arith.constant 0 : index
    %c0_9 = arith.constant 0 : index
    %8 = vector.load %arg1[%c0_7, %c0_8, %c0_9] : memref<1x80x16xf32, #tpu.memory_space<vmem>>, vector<1x80x16xf32>
    %9 = vector.shape_cast %8 : vector<1x80x16xf32> to vector<80x16xf32>
    %c0_10 = arith.constant 0 : index
    %c0_11 = arith.constant 0 : index
    %10 = vector.load %arg3[%c0_10, %c0_11] : memref<80x32xf32, #tpu.memory_space<vmem>>, vector<80x32xf32>
    %cst = arith.constant dense<0.000000e+00> : vector<80x16xf32>
    %11 = tpu.matmul %10, %7, %cst {dimension_numbers = #tpu.dot_dimension_numbers<[1], [0], [0], [1], [0, 0, 1, 1], [], []>} : vector<80x32xf32>, vector<32x16xf32>, vector<80x16xf32> -> vector<80x16xf32>
    %12 = arith.addf %9, %11 : vector<80x16xf32>
    %13 = vector.extract_strided_slice %12 {offsets = [0, 0], sizes = [64, 16], strides = [1, 1]} : vector<80x16xf32> to vector<64x16xf32>
    %14 = arith.negf %13 : vector<64x16xf32>
    %15 = math.exp %14 : vector<64x16xf32>
    %cst_12 = arith.constant 1.000000e+00 : f32
    %16 = vector.broadcast %cst_12 : f32 to vector<64x16xf32>
    %17 = arith.addf %16, %15 : vector<64x16xf32>
    %18 = arith.divf %16, %17 : vector<64x16xf32>
    %19 = vector.extract_strided_slice %12 {offsets = [64, 0], sizes = [16, 16], strides = [1, 1]} : vector<80x16xf32> to vector<16x16xf32>
    %20 = math.tanh %19 : vector<16x16xf32>
    %21 = vector.extract_strided_slice %18 {offsets = [0, 0], sizes = [16, 16], strides = [1, 1]} : vector<64x16xf32> to vector<16x16xf32>
    %22 = vector.extract_strided_slice %18 {offsets = [16, 0], sizes = [16, 16], strides = [1, 1]} : vector<64x16xf32> to vector<16x16xf32>
    %23 = vector.extract_strided_slice %18 {offsets = [32, 0], sizes = [16, 16], strides = [1, 1]} : vector<64x16xf32> to vector<16x16xf32>
    %24 = vector.extract_strided_slice %18 {offsets = [48, 0], sizes = [16, 16], strides = [1, 1]} : vector<64x16xf32> to vector<16x16xf32>
    %c0_13 = arith.constant 0 : index
    %c0_14 = arith.constant 0 : index
    %c0_15 = arith.constant 0 : index
    %25 = vector.load %arg2[%c0_13, %c0_14, %c0_15] : memref<1x1x16xf32, #tpu.memory_space<vmem>>, vector<1x1x16xf32>
    %26 = vector.shape_cast %25 : vector<1x1x16xf32> to vector<1x16xf32>
    %27 = arith.mulf %21, %20 : vector<16x16xf32>
    %28 = arith.mulf %22, %5 : vector<16x16xf32>
    %29 = arith.addf %27, %28 : vector<16x16xf32>
    %30 = arith.mulf %23, %6 : vector<16x16xf32>
    %31 = arith.addf %29, %30 : vector<16x16xf32>
    %32 = vector.broadcast %26 : vector<1x16xf32> to vector<16x16xf32>
    %33 = arith.mulf %31, %32 : vector<16x16xf32>
    %34 = math.tanh %33 : vector<16x16xf32>
    %35 = arith.mulf %24, %34 : vector<16x16xf32>
    %c0_16 = arith.constant 0 : index
    %c0_17 = arith.constant 0 : index
    %c0_18 = arith.constant 0 : index
    %36 = vector.load %arg4[%c0_16, %c0_17, %c0_18] : memref<1x16x16xf32, #tpu.memory_space<vmem>>, vector<1x16x16xf32>
    %37 = vector.shape_cast %36 : vector<1x16x16xf32> to vector<16x16xf32>
    %38 = vector.shape_cast %35 : vector<16x16xf32> to vector<1x16x16xf32>
    tpu.vector_store %arg4[%c0_16, %c0_17, %c0_18], %38 {strides = array<i32>} : memref<1x16x16xf32, #tpu.memory_space<vmem>>, vector<1x16x16xf32>,
    %c0_19 = arith.constant 0 : index
    %c2_20 = arith.constant 2 : index
    %39 = vector.load %arg5[%c0_19, %c2_20] : memref<16x18xf32, #tpu.memory_space<vmem>>, vector<16x16xf32>
    tpu.vector_store %arg5[%c0_19, %c2_20], %35 {strides = array<i32>} : memref<16x18xf32, #tpu.memory_space<vmem>>, vector<16x16xf32>,
    %c0_21 = arith.constant 0 : index
    %c2_22 = arith.constant 2 : index
    %40 = vector.load %arg6[%c0_21, %c2_22] : memref<16x18xf32, #tpu.memory_space<vmem>>, vector<16x16xf32>
    tpu.vector_store %arg6[%c0_21, %c2_22], %33 {strides = array<i32>} : memref<16x18xf32, #tpu.memory_space<vmem>>, vector<16x16xf32>,
    return
  }
  func.func @transform_0(%arg0: i32) -> (i32, i32, i32) {
    %c0_i32 = arith.constant 0 : i32
    %c0_i32_0 = arith.constant 0 : i32
    %c0_i32_1 = arith.constant 0 : i32
    return %arg0, %c0_i32, %c0_i32_0 : i32, i32, i32
  }
  func.func @transform_1(%arg0: i32) -> (i32, i32, i32) {
    %c0_i32 = arith.constant 0 : i32
    %c0_i32_0 = arith.constant 0 : i32
    %c0_i32_1 = arith.constant 0 : i32
    return %arg0, %c0_i32, %c0_i32_0 : i32, i32, i32
  }
  func.func @transform_2(%arg0: i32) -> (i32, i32) {
    %c0_i32 = arith.constant 0 : i32
    %c0_i32_0 = arith.constant 0 : i32
    %c0_i32_1 = arith.constant 0 : i32
    return %c0_i32, %c0_i32_0 : i32, i32
  }
  func.func @transform_3(%arg0: i32) -> (i32, i32, i32) {
    %c0_i32 = arith.constant 0 : i32
    %c0_i32_0 = arith.constant 0 : i32
    %c0_i32_1 = arith.constant 0 : i32
    return %arg0, %c0_i32, %c0_i32_0 : i32, i32, i32
  }
}

module attributes {stable_mosaic.version = 11 : i64} {
  func.func @_mdlstm_wavefront_kernel(%arg0: i32, %arg1: memref<1x160x16xf32, #tpu.memory_space<vmem>>, %arg2: memref<1x1x16xf32, #tpu.memory_space<vmem>>, %arg3: memref<160x64xf32, #tpu.memory_space<vmem>>, %arg4: memref<1x32x16xf32, #tpu.memory_space<vmem>>, %arg5: memref<32x18xf32, #tpu.memory_space<vmem>>, %arg6: memref<32x18xf32, #tpu.memory_space<vmem>>) attributes {dimension_semantics = [#tpu.dimension_semantics<arbitrary>], iteration_bounds = array<i64: 15>, scalar_prefetch = 0 : i64, scratch_operands = 2 : i64, tpu.core_type = #tpu.core_type<tc>, window_params = [{transform_indices = @transform_0, window_bounds = array<i64: 1, 160, 16>}, {transform_indices = @transform_1, window_bounds = array<i64: 1, 1, 16>}, {pipeline_mode = #tpu.pipeline_mode<synchronous>, transform_indices = @transform_2, window_bounds = array<i64: 160, 64>}, {transform_indices = @transform_3, window_bounds = array<i64: 1, 32, 16>}]} {
    %c0_i32 = arith.constant 0 : i32
    %0 = arith.cmpi eq, %arg0, %c0_i32 : i32
    %1 = arith.extui %0 : i1 to i32
    %c0_i32_0 = arith.constant 0 : i32
    %2 = arith.cmpi ne, %1, %c0_i32_0 : i32
    scf.if %2 {
      %cst_23 = arith.constant 0.000000e+00 : f32
      %41 = vector.broadcast %cst_23 : f32 to vector<32x18xf32>
      %c0_24 = arith.constant 0 : index
      %c0_25 = arith.constant 0 : index
      %42 = vector.load %arg5[%c0_24, %c0_25] : memref<32x18xf32, #tpu.memory_space<vmem>>, vector<32x18xf32>
      tpu.vector_store %arg5[%c0_24, %c0_25], %41 {strides = array<i32>} : memref<32x18xf32, #tpu.memory_space<vmem>>, vector<32x18xf32>,
      %cst_26 = arith.constant 0.000000e+00 : f32
      %43 = vector.broadcast %cst_26 : f32 to vector<32x18xf32>
      %c0_27 = arith.constant 0 : index
      %c0_28 = arith.constant 0 : index
      %44 = vector.load %arg6[%c0_27, %c0_28] : memref<32x18xf32, #tpu.memory_space<vmem>>, vector<32x18xf32>
      tpu.vector_store %arg6[%c0_27, %c0_28], %43 {strides = array<i32>} : memref<32x18xf32, #tpu.memory_space<vmem>>, vector<32x18xf32>,
    } else {
    }
    %c0 = arith.constant 0 : index
    %c0_1 = arith.constant 0 : index
    %3 = vector.load %arg5[%c0, %c0_1] : memref<32x18xf32, #tpu.memory_space<vmem>>, vector<32x16xf32>
    %c0_2 = arith.constant 0 : index
    %c2 = arith.constant 2 : index
    %4 = vector.load %arg5[%c0_2, %c2] : memref<32x18xf32, #tpu.memory_space<vmem>>, vector<32x16xf32>
    %c0_3 = arith.constant 0 : index
    %c0_4 = arith.constant 0 : index
    %5 = vector.load %arg6[%c0_3, %c0_4] : memref<32x18xf32, #tpu.memory_space<vmem>>, vector<32x16xf32>
    %c0_5 = arith.constant 0 : index
    %c2_6 = arith.constant 2 : index
    %6 = vector.load %arg6[%c0_5, %c2_6] : memref<32x18xf32, #tpu.memory_space<vmem>>, vector<32x16xf32>
    %7 = tpu.concatenate %3, %4 in 0 : vector<32x16xf32>, vector<32x16xf32> -> vector<64x16xf32>
    %c0_7 = arith.constant 0 : index
    %c0_8 = arith.constant 0 : index
    %c0_9 = arith.constant 0 : index
    %8 = vector.load %arg1[%c0_7, %c0_8, %c0_9] : memref<1x160x16xf32, #tpu.memory_space<vmem>>, vector<1x160x16xf32>
    %9 = vector.shape_cast %8 : vector<1x160x16xf32> to vector<160x16xf32>
    %c0_10 = arith.constant 0 : index
    %c0_11 = arith.constant 0 : index
    %10 = vector.load %arg3[%c0_10, %c0_11] : memref<160x64xf32, #tpu.memory_space<vmem>>, vector<160x64xf32>
    %cst = arith.constant dense<0.000000e+00> : vector<160x16xf32>
    %11 = tpu.matmul %10, %7, %cst {dimension_numbers = #tpu.dot_dimension_numbers<[1], [0], [0], [1], [0, 0, 1, 1], [], []>} : vector<160x64xf32>, vector<64x16xf32>, vector<160x16xf32> -> vector<160x16xf32>
    %12 = arith.addf %9, %11 : vector<160x16xf32>
    %13 = vector.extract_strided_slice %12 {offsets = [0, 0], sizes = [128, 16], strides = [1, 1]} : vector<160x16xf32> to vector<128x16xf32>
    %14 = arith.negf %13 : vector<128x16xf32>
    %15 = math.exp %14 : vector<128x16xf32>
    %cst_12 = arith.constant 1.000000e+00 : f32
    %16 = vector.broadcast %cst_12 : f32 to vector<128x16xf32>
    %17 = arith.addf %16, %15 : vector<128x16xf32>
    %18 = arith.divf %16, %17 : vector<128x16xf32>
    %19 = vector.extract_strided_slice %12 {offsets = [128, 0], sizes = [32, 16], strides = [1, 1]} : vector<160x16xf32> to vector<32x16xf32>
    %20 = math.tanh %19 : vector<32x16xf32>
    %21 = vector.extract_strided_slice %18 {offsets = [0, 0], sizes = [32, 16], strides = [1, 1]} : vector<128x16xf32> to vector<32x16xf32>
    %22 = vector.extract_strided_slice %18 {offsets = [32, 0], sizes = [32, 16], strides = [1, 1]} : vector<128x16xf32> to vector<32x16xf32>
    %23 = vector.extract_strided_slice %18 {offsets = [64, 0], sizes = [32, 16], strides = [1, 1]} : vector<128x16xf32> to vector<32x16xf32>
    %24 = vector.extract_strided_slice %18 {offsets = [96, 0], sizes = [32, 16], strides = [1, 1]} : vector<128x16xf32> to vector<32x16xf32>
    %c0_13 = arith.constant 0 : index
    %c0_14 = arith.constant 0 : index
    %c0_15 = arith.constant 0 : index
    %25 = vector.load %arg2[%c0_13, %c0_14, %c0_15] : memref<1x1x16xf32, #tpu.memory_space<vmem>>, vector<1x1x16xf32>
    %26 = vector.shape_cast %25 : vector<1x1x16xf32> to vector<1x16xf32>
    %27 = arith.mulf %21, %20 : vector<32x16xf32>
    %28 = arith.mulf %22, %5 : vector<32x16xf32>
    %29 = arith.addf %27, %28 : vector<32x16xf32>
    %30 = arith.mulf %23, %6 : vector<32x16xf32>
    %31 = arith.addf %29, %30 : vector<32x16xf32>
    %32 = vector.broadcast %26 : vector<1x16xf32> to vector<32x16xf32>
    %33 = arith.mulf %31, %32 : vector<32x16xf32>
    %34 = math.tanh %33 : vector<32x16xf32>
    %35 = arith.mulf %24, %34 : vector<32x16xf32>
    %c0_16 = arith.constant 0 : index
    %c0_17 = arith.constant 0 : index
    %c0_18 = arith.constant 0 : index
    %36 = vector.load %arg4[%c0_16, %c0_17, %c0_18] : memref<1x32x16xf32, #tpu.memory_space<vmem>>, vector<1x32x16xf32>
    %37 = vector.shape_cast %36 : vector<1x32x16xf32> to vector<32x16xf32>
    %38 = vector.shape_cast %35 : vector<32x16xf32> to vector<1x32x16xf32>
    tpu.vector_store %arg4[%c0_16, %c0_17, %c0_18], %38 {strides = array<i32>} : memref<1x32x16xf32, #tpu.memory_space<vmem>>, vector<1x32x16xf32>,
    %c0_19 = arith.constant 0 : index
    %c2_20 = arith.constant 2 : index
    %39 = vector.load %arg5[%c0_19, %c2_20] : memref<32x18xf32, #tpu.memory_space<vmem>>, vector<32x16xf32>
    tpu.vector_store %arg5[%c0_19, %c2_20], %35 {strides = array<i32>} : memref<32x18xf32, #tpu.memory_space<vmem>>, vector<32x16xf32>,
    %c0_21 = arith.constant 0 : index
    %c2_22 = arith.constant 2 : index
    %40 = vector.load %arg6[%c0_21, %c2_22] : memref<32x18xf32, #tpu.memory_space<vmem>>, vector<32x16xf32>
    tpu.vector_store %arg6[%c0_21, %c2_22], %33 {strides = array<i32>} : memref<32x18xf32, #tpu.memory_space<vmem>>, vector<32x16xf32>,
    return
  }
  func.func @transform_0(%arg0: i32) -> (i32, i32, i32) {
    %c0_i32 = arith.constant 0 : i32
    %c0_i32_0 = arith.constant 0 : i32
    %c0_i32_1 = arith.constant 0 : i32
    return %arg0, %c0_i32, %c0_i32_0 : i32, i32, i32
  }
  func.func @transform_1(%arg0: i32) -> (i32, i32, i32) {
    %c0_i32 = arith.constant 0 : i32
    %c0_i32_0 = arith.constant 0 : i32
    %c0_i32_1 = arith.constant 0 : i32
    return %arg0, %c0_i32, %c0_i32_0 : i32, i32, i32
  }
  func.func @transform_2(%arg0: i32) -> (i32, i32) {
    %c0_i32 = arith.constant 0 : i32
    %c0_i32_0 = arith.constant 0 : i32
    %c0_i32_1 = arith.constant 0 : i32
    return %c0_i32, %c0_i32_0 : i32, i32
  }
  func.func @transform_3(%arg0: i32) -> (i32, i32, i32) {
    %c0_i32 = arith.constant 0 : i32
    %c0_i32_0 = arith.constant 0 : i32
    %c0_i32_1 = arith.constant 0 : i32
    return %arg0, %c0_i32, %c0_i32_0 : i32, i32, i32
  }
}

</mosaic_0001>

<llo_original>
// kernel: multi_mdlstm_forward.3
$region0: #{multi_mdlstm_forward.3}
  #allocation0 [shape = 'u32[]', space=smem, size = 0x4, offset = 0x4, fixed_abs, tag = 'smem constant byte address 0x4 - core index']
  #allocation1 [shape = 'u32[144,128]{1,0:T(1,128)}', space=vmem, size = 0x12000, scoped, tag = 'internal scratch']
  #allocation2 [shape = 'f32[16,18]{1,0:T(8,128)}', space=vmem, size = 0x2000, scoped, tag = 'scratch operand']
  #allocation3 [shape = 'f32[16,18]{1,0:T(8,128)}', space=vmem, size = 0x2000, scoped, tag = 'scratch operand']
  %s0 = inlined_call_operand.vmem [shape: f32[15,80,16], index: 0, kind: input, shape index: {}]
  %s1 = inlined_call_operand.vmem [shape: f32[15,1,16], index: 1, kind: input, shape index: {}]
  %s2 = inlined_call_operand.vmem [shape: f32[80,32], index: 2, kind: input, shape index: {}]
  %s3 = inlined_call_operand.vmem [shape: f32[15,16,16], index: 3, kind: output, shape index: {}]
  %s4 = sld [smem:[#allocation0]]
  $region49: #{multi_mdlstm_forward.3} parent=0
    _
  %s6 = ssub.s32 1, %s4
  %s7 = scalar_select 0, %s6, %s4
  loop: start=0, step=1, limit=17
  $region2: #{multi_mdlstm_forward.3} parent=0 // loop_pre_header
    _
  $region3: #{multi_mdlstm_forward.3} parent=0 // loop_header
    %s9 = sphi 0, %s13
    %p10 = scmp.ge.s32.totalorder %s9, 17
    %s19 = sphi 0, %s21
    %s22 = sphi 0, %s19
    %s23 = sphi 0, %s22
    %s39 = sphi 0, %s23
    %s45 = sphi 0, %s47
    %s48 = sphi 0, %s45
    %s49 = sphi 0, %s48
    %s65 = sphi 0, %s49
    %s69 = sphi 0, %s69
    %s71 = sphi 0, %s69
    %s72 = sphi 0, %s71
    %s86 = sphi 0, %s72
    %s92 = sphi 0, %s94
    %s95 = sphi 0, %s92
    %s96 = sphi 0, %s95
    %s112 = sphi 0, %s96
  $region4: #{multi_mdlstm_forward.3} parent=0 // loop_header_branch
    %12 = sbr.rel (%p10) target = $region8
  $region5: #{multi_mdlstm_forward.3} parent=0 // loop_body
    %s14 = ssub.s32 %s9, 1
    %s15 = ssub.s32 %s9, 2
    %s16 = sadd.s32 %s9, 1
    %s17 = ssub.s32 %s9, %s16
    %p18 = scmp.eq.s32.totalorder %s17, 0
    %s20 = sadd.s32 %s19, 1
    %s21 = scalar_select %p18, %s19, %s20
    %p24 = pneg %p18
    %p25 = scmp.eq.s32.totalorder %s9, 14
    %p26 = por %p24, %p25
    %p27 = scmp.ne.s32.totalorder %s19, %s22
    %p28 = scmp.eq.s32.totalorder %s9, 0
    %p29 = por %p27, %p28
    %p30 = scmp.ne.s32.totalorder %s19, %s22
    %p31 = scmp.eq.s32.totalorder %s14, 14
    %p32 = por %p30, %p31
    %p33 = scmp.ne.s32.totalorder %s22, %s23
    %p34 = scmp.eq.s32.totalorder %s14, 0
    %p35 = por %p33, %p34
    %p36 = scmp.ne.s32.totalorder %s22, %s23
    %p37 = scmp.eq.s32.totalorder %s15, 14
    %p38 = por %p36, %p37
    %p40 = scmp.ne.s32.totalorder %s23, %s39
    %p41 = scmp.eq.s32.totalorder %s15, 0
    %p42 = por %p40, %p41
    %s43 = ssub.s32 %s9, %s16
    %p44 = scmp.eq.s32.totalorder %s43, 0
    %s46 = sadd.s32 %s45, 1
    %s47 = scalar_select %p44, %s45, %s46
    %p50 = pneg %p44
    %p51 = scmp.eq.s32.totalorder %s9, 14
    %p52 = por %p50, %p51
    %p53 = scmp.ne.s32.totalorder %s45, %s48
    %p54 = scmp.eq.s32.totalorder %s9, 0
    %p55 = por %p53, %p54
    %p56 = scmp.ne.s32.totalorder %s45, %s48
    %p57 = scmp.eq.s32.totalorder %s14, 14
    %p58 = por %p56, %p57
    %p59 = scmp.ne.s32.totalorder %s48, %s49
    %p60 = scmp.eq.s32.totalorder %s14, 0
    %p61 = por %p59, %p60
    %p62 = scmp.ne.s32.totalorder %s48, %s49
    %p63 = scmp.eq.s32.totalorder %s15, 14
    %p64 = por %p62, %p63
    %p66 = scmp.ne.s32.totalorder %s49, %s65
    %p67 = scmp.eq.s32.totalorder %s15, 0
    %p68 = por %p66, %p67
    %s70 = sadd.s32 %s69, 1
    %p73 = scmp.eq.s32.totalorder %s9, 14
    %p74 = scmp.ne.s32.totalorder %s69, %s71
    %p75 = scmp.eq.s32.totalorder %s9, 0
    %p76 = por %p74, %p75
    %p77 = scmp.ne.s32.totalorder %s69, %s71
    %p78 = scmp.eq.s32.totalorder %s14, 14
    %p79 = por %p77, %p78
    %p80 = scmp.ne.s32.totalorder %s71, %s72
    %p81 = scmp.eq.s32.totalorder %s14, 0
    %p82 = por %p80, %p81
    %p83 = scmp.ne.s32.totalorder %s71, %s72
    %p84 = scmp.eq.s32.totalorder %s15, 14
    %p85 = por %p83, %p84
    %p87 = scmp.ne.s32.totalorder %s72, %s86
    %p88 = scmp.eq.s32.totalorder %s15, 0
    %p89 = por %p87, %p88
    %s90 = ssub.s32 %s9, %s16
    %p91 = scmp.eq.s32.totalorder %s90, 0
    %s93 = sadd.s32 %s92, 1
    %s94 = scalar_select %p91, %s92, %s93
    %p97 = pneg %p91
    %p98 = scmp.eq.s32.totalorder %s9, 14
    %p99 = por %p97, %p98
    %p100 = scmp.ne.s32.totalorder %s92, %s95
    %p101 = scmp.eq.s32.totalorder %s9, 0
    %p102 = por %p100, %p101
    %p103 = scmp.ne.s32.totalorder %s92, %s95
    %p104 = scmp.eq.s32.totalorder %s14, 14
    %p105 = por %p103, %p104
    %p106 = scmp.ne.s32.totalorder %s95, %s96
    %p107 = scmp.eq.s32.totalorder %s14, 0
    %p108 = por %p106, %p107
    %p109 = scmp.ne.s32.totalorder %s95, %s96
    %p110 = scmp.eq.s32.totalorder %s15, 14
    %p111 = por %p109, %p110
    %p113 = scmp.ne.s32.totalorder %s96, %s112
    %p114 = scmp.eq.s32.totalorder %s15, 0
    %p115 = por %p113, %p114
    %p116 = scmp.le.s32.totalorder 1, %s9
    %p117 = scmp.lt.s32.totalorder %s9, 16
    %p118 = pnand %p116, %p117
    %p119 = pneg %p118
    // Predicated region
    $region9: #{multi_mdlstm_forward.3} parent=5 // pred_check
      _
    $region10: #{multi_mdlstm_forward.3} parent=5 // pred_check_branch
      %121 = sbr.rel (%p118) target = $region12
    $region11: #{multi_mdlstm_forward.3} parent=5 // pred_region
      %s122 = ssub.s32 %s9, 1
      // Predicated region
      $region13: #{multi_mdlstm_forward.3} parent=11 // pred_check
        %p123 = pneg %p82
      $region14: #{multi_mdlstm_forward.3} parent=11 // pred_check_branch
        %125 = sbr.rel (%p123) target = $region16
      $region15: #{multi_mdlstm_forward.3} parent=11 // pred_region
        _
      $region16: #{multi_mdlstm_forward.3} parent=11 // pred_fallthru
        _
    $region12: #{multi_mdlstm_forward.3} parent=5 // pred_fallthru
      _
    %p126 = scmp.lt.s32.totalorder %s9, 15
    // Predicated region
    $region17: #{multi_mdlstm_forward.3} parent=5 // pred_check
      %p127 = pneg %p126
    $region18: #{multi_mdlstm_forward.3} parent=5 // pred_check_branch
      %129 = sbr.rel (%p127) target = $region20
    $region19: #{multi_mdlstm_forward.3} parent=5 // pred_region
      // Predicated region
      $region21: #{multi_mdlstm_forward.3} parent=19 // pred_check
        %p130 = pneg %p29
      $region22: #{multi_mdlstm_forward.3} parent=19 // pred_check_branch
        %132 = sbr.rel (%p130) target = $region24
      $region23: #{multi_mdlstm_forward.3} parent=19 // pred_region
        %p133 = scmp.lt.s32.totalorder %s9, 14
        %s134 = scalar_select %p133, %s9, 14
        %s135 = smul.addr %s134, 10
        %s136 = smul.addr %s135, 8
        %s137 = scalar_lea.vmem %s0, %s136
      $region24: #{multi_mdlstm_forward.3} parent=19 // pred_fallthru
        _
      // Predicated region
      $region25: #{multi_mdlstm_forward.3} parent=19 // pred_check
        %p138 = pneg %p55
      $region26: #{multi_mdlstm_forward.3} parent=19 // pred_check_branch
        %140 = sbr.rel (%p138) target = $region28
      $region27: #{multi_mdlstm_forward.3} parent=19 // pred_region
        %p141 = scmp.lt.s32.totalorder %s9, 14
        %s142 = scalar_select %p141, %s9, 14
        %s143 = scalar_lea.vmem %s1, %s142
      $region28: #{multi_mdlstm_forward.3} parent=19 // pred_fallthru
        _
    $region20: #{multi_mdlstm_forward.3} parent=5 // pred_fallthru
      _
    %p144 = scmp.le.s32.totalorder 1, %s9
    %p145 = scmp.lt.s32.totalorder %s9, 16
    %p146 = pnand %p144, %p145
    %p147 = pneg %p146
    // Predicated region
    $region29: #{multi_mdlstm_forward.3} parent=5 // pred_check
      _
    $region30: #{multi_mdlstm_forward.3} parent=5 // pred_check_branch
      %149 = sbr.rel (%p146) target = $region32
    $region31: #{multi_mdlstm_forward.3} parent=5 // pred_region
      %s150 = ssub.s32 %s9, 1
      %p151 = scmp.lt.s32.totalorder %s14, 14
      %s152 = scalar_select %p151, %s14, 14
      %s153 = smul.addr %s152, 10
      %s154 = smul.addr %s153, 8
      %s155 = scalar_lea.vmem %s0, %s154
      %p156 = pneg %p35
      %p157 = pneg %p32
      %p158 = scmp.lt.s32.totalorder %s14, 14
      %s159 = scalar_select %p158, %s14, 14
      %s160 = scalar_lea.vmem %s1, %s159
      %p161 = pneg %p61
      %p162 = pneg %p58
      %p163 = pneg %p82
      %p164 = pneg %p79
      %p165 = pneg %p108
      %p166 = pneg %p105
      %p167 = scmp.lt.s32.totalorder %s14, 14
      %s168 = scalar_select %p167, %s14, 14
      %s169 = smul.addr %s168, 2
      %s170 = smul.addr %s169, 8
      %s171 = scalar_lea.vmem %s3, %s170
      %p172 = scmp.lt.s32.totalorder %s14, 14
      %s173 = scalar_select %p172, %s14, 14
      %s174 = smul.addr %s173, 10
      %s175 = smul.addr %s174, 8
      %s176 = scalar_lea.vmem %s0, %s175
      %p177 = scmp.lt.s32.totalorder %s14, 14
      %s178 = scalar_select %p177, %s14, 14
      %s179 = scalar_lea.vmem %s1, %s178
      %p180 = scmp.lt.s32.totalorder %s14, 14
      %s181 = scalar_select %p180, %s14, 14
      %s182 = smul.addr %s181, 2
      %s183 = smul.addr %s182, 8
      %s184 = scalar_lea.vmem %s3, %s183
      %p185 = scmp.eq.s32.totalorder %s14, 0
      // Predicated region
      $region33: #{multi_mdlstm_forward.3} parent=31 // pred_check
        %p186 = pneg %p185
      $region34: #{multi_mdlstm_forward.3} parent=31 // pred_check_branch
        %188 = sbr.rel (%p186) target = $region36
      $region35: #{multi_mdlstm_forward.3} parent=31 // pred_region
        %vm189 = vcmask 146432
        %190 = vst.msk [vmem:[#allocation2] sm:$0xff] %vm189, 0.0
        %191 = vst.msk [vmem:[#allocation2 + $0x8] sm:$0xff] %vm189, 0.0
        %192 = vst.msk [vmem:[#allocation3] sm:$0xff] %vm189, 0.0
        %193 = vst.msk [vmem:[#allocation3 + $0x8] sm:$0xff] %vm189, 0.0
      $region36: #{multi_mdlstm_forward.3} parent=31 // pred_fallthru
        _
      %v194 = vld [vmem:[#allocation2] sm:$0xff]
      %v195 = vld [vmem:[#allocation2 + $0x8] sm:$0xff]
      %v196 = vld [vmem:[#allocation3] sm:$0xff]
      %v197 = vld [vmem:[#allocation3 + $0x8] sm:$0xff]
      %200 = vrot.lane.b32.xlu0 %v194, 126
      %v201 = vpop.permute.xlu0 %200
      %202 = vrot.lane.b32.xlu0 %v195, 126
      %v203 = vpop.permute.xlu0 %202
      %v206 = vld [vmem:[%s176] sm:$0xff]
      %v207 = vld [vmem:[%s176 + $0x8] sm:$0xff]
      %v208 = vld [vmem:[%s176 + $0x10] sm:$0xff]
      %v209 = vld [vmem:[%s176 + $0x18] sm:$0xff]
      %v210 = vld [vmem:[%s176 + $0x20] sm:$0xff]
      %v211 = vld [vmem:[%s176 + $0x28] sm:$0xff]
      %v212 = vld [vmem:[%s176 + $0x30] sm:$0xff]
      %v213 = vld [vmem:[%s176 + $0x38] sm:$0xff]
      %v214 = vld [vmem:[%s176 + $0x40] sm:$0xff]
      %v215 = vld [vmem:[%s176 + $0x48] sm:$0xff]
      %v216 = vld [vmem:[%s2] sm:$0xff]
      %v217 = vld [vmem:[%s2 + $0x8] sm:$0xff]
      %v218 = vld [vmem:[%s2 + $0x10] sm:$0xff]
      %v219 = vld [vmem:[%s2 + $0x18] sm:$0xff]
      %v220 = vld [vmem:[%s2 + $0x20] sm:$0xff]
      %v221 = vld [vmem:[%s2 + $0x28] sm:$0xff]
      %v222 = vld [vmem:[%s2 + $0x30] sm:$0xff]
      %v223 = vld [vmem:[%s2 + $0x38] sm:$0xff]
      %v224 = vld [vmem:[%s2 + $0x40] sm:$0xff]
      %v225 = vld [vmem:[%s2 + $0x48] sm:$0xff]
      %vm226 = vcmask 261120
      %v228 = vsel %vm226, %v216, 0
      %v231 = vsel %vm226, %v217, 0
      %v234 = vsel %vm226, %v218, 0
      %v237 = vsel %vm226, %v219, 0
      %v240 = vsel %vm226, %v220, 0
      %v243 = vsel %vm226, %v221, 0
      %v246 = vsel %vm226, %v222, 0
      %v249 = vsel %vm226, %v223, 0
      %v252 = vsel %vm226, %v224, 0
      %v255 = vsel %vm226, %v225, 0
      %257 = vmatprep.subr.mxu0 0.0
      %258 = vmatpush1.msra.mxu0 %v194
      %259 = vmatprep.subr.mxu0 0.0
      %260 = vmatpush1.msra.mxu0 %v195
      %261 = vmatprep.subr.mxu0 0.0
      %262 = vmatpush1.msra.mxu0 %v201
      %263 = vmatprep.subr.mxu0 0.0
      %264 = vmatpush1.msra.mxu0 %v203
      %265 = vmatprep.subr.mxu0 0.0
      %266 = vmatpush1.msra.mxu0 0.0
      %267 = vmatprep.subr.mxu0 0.0
      %268 = vmatpush1.msra.mxu0 0.0
      %269 = vmatprep.subr.mxu0 0.0
      %270 = vmatpush1.msra.mxu0 0.0
      %271 = vmatprep.subr.mxu0 0.0
      %272 = vmatpush1.msra.mxu0 0.0
      %273 = vmatprep.subr.mxu0 0.0
      %274 = vmatpush1.msra.mxu0 0.0
      %275 = vmatprep.subr.mxu0 0.0
      %276 = vmatpush1.msra.mxu0 0.0
      %277 = vmatprep.subr.mxu0 0.0
      %278 = vmatpush1.msra.mxu0 0.0
      %279 = vmatprep.subr.mxu0 0.0
      %280 = vmatpush1.msra.mxu0 0.0
      %281 = vmatprep.subr.mxu0 0.0
      %282 = vmatpush1.msra.mxu0 0.0
      %283 = vmatprep.subr.mxu0 0.0
      %284 = vmatpush1.msra.mxu0 0.0
      %285 = vmatprep.subr.mxu0 0.0
      %286 = vmatpush1.msra.mxu0 0.0
      %287 = vmatprep.subr.mxu0 0.0
      %288 = vmatpush1.msra.mxu0 0.0
      %289 = vmatprep.subr.mxu0 0.0
      %290 = vmatpush1.msra.mxu0 0.0
      %291 = vmatprep.subr.mxu0 0.0
      %292 = vmatpush1.msra.mxu0 0.0
      %293 = vmatprep.subr.mxu0 0.0
      %294 = vmatpush1.msra.mxu0 0.0
      %295 = vmatprep.subr.mxu0 0.0
      %296 = vmatpush1.msra.mxu0 0.0
      %297 = vmatprep.subr.mxu0 0.0
      %298 = vmatpush1.msra.mxu0 0.0
      %299 = vmatprep.subr.mxu0 0.0
      %300 = vmatpush1.msra.mxu0 0.0
      %301 = vmatprep.subr.mxu0 0.0
      %302 = vmatpush1.msra.mxu0 0.0
      %303 = vmatprep.subr.mxu0 0.0
      %304 = vmatpush1.msra.mxu0 0.0
      %305 = vmatprep.subr.mxu0 0.0
      %306 = vmatpush1.msra.mxu0 0.0
      %307 = vmatprep.subr.mxu0 0.0
      %308 = vmatpush1.msra.mxu0 0.0
      %309 = vmatprep.subr.mxu0 0.0
      %310 = vmatpush1.msra.mxu0 0.0
      %311 = vmatprep.subr.mxu0 0.0
      %312 = vmatpush1.msra.mxu0 0.0
      %313 = vmatprep.subr.mxu0 0.0
      %314 = vmatpush1.msra.mxu0 0.0
      %315 = vmatprep.subr.mxu0 0.0
      %316 = vmatpush1.msra.mxu0 0.0
      %317 = vmatprep.subr.mxu0 0.0
      %318 = vmatpush1.msra.mxu0 0.0
      %319 = vmatprep.subr.mxu0 0.0
      %320 = vmatpush1.msra.mxu0 0.0
      %321 = vmatprep.mubr.f32.mxu0 0.0
      %322 = vmatmul.mubr.f32.gmra.mrb[0].mxu0 %v228
      %v323 = vpop.f32.mrb[0].mxu0
      %v324 = vadd.f32 0.0, %v323
      %v325 = vpop.f32.mrb[0].mxu0
      %326 = vmatprep.mubr.f32.mxu0 0.0
      %327 = vmatmul.mubr.f32.gmra.mrb[0].mxu0 %v231
      %v328 = vpop.f32.mrb[0].mxu0
      %v329 = vadd.f32 0.0, %v328
      %v330 = vpop.f32.mrb[0].mxu0
      %331 = vmatprep.mubr.f32.mxu0 0.0
      %332 = vmatmul.mubr.f32.gmra.mrb[0].mxu0 %v234
      %v333 = vpop.f32.mrb[0].mxu0
      %v334 = vadd.f32 0.0, %v333
      %v335 = vpop.f32.mrb[0].mxu0
      %336 = vmatprep.mubr.f32.mxu0 0.0
      %337 = vmatmul.mubr.f32.gmra.mrb[0].mxu0 %v237
      %v338 = vpop.f32.mrb[0].mxu0
      %v339 = vadd.f32 0.0, %v338
      %v340 = vpop.f32.mrb[0].mxu0
      %341 = vmatprep.mubr.f32.mxu0 0.0
      %342 = vmatmul.mubr.f32.gmra.mrb[0].mxu0 %v240
      %v343 = vpop.f32.mrb[0].mxu0
      %v344 = vadd.f32 0.0, %v343
      %v345 = vpop.f32.mrb[0].mxu0
      %346 = vmatprep.mubr.f32.mxu0 0.0
      %347 = vmatmul.mubr.f32.gmra.mrb[0].mxu0 %v243
      %v348 = vpop.f32.mrb[0].mxu0
      %v349 = vadd.f32 0.0, %v348
      %v350 = vpop.f32.mrb[0].mxu0
      %351 = vmatprep.mubr.f32.mxu0 0.0
      %352 = vmatmul.mubr.f32.gmra.mrb[0].mxu0 %v246
      %v353 = vpop.f32.mrb[0].mxu0
      %v354 = vadd.f32 0.0, %v353
      %v355 = vpop.f32.mrb[0].mxu0
      %356 = vmatprep.mubr.f32.mxu0 0.0
      %357 = vmatmul.mubr.f32.gmra.mrb[0].mxu0 %v249
      %v358 = vpop.f32.mrb[0].mxu0
      %v359 = vadd.f32 0.0, %v358
      %v360 = vpop.f32.mrb[0].mxu0
      %361 = vmatprep.mubr.f32.mxu0 0.0
      %362 = vmatmul.mubr.f32.gmra.mrb[0].mxu0 %v252
      %v363 = vpop.f32.mrb[0].mxu0
      %v364 = vadd.f32 0.0, %v363
      %v365 = vpop.f32.mrb[0].mxu0
      %366 = vmatprep.mubr.f32.mxu0 0.0
      %367 = vmatmul.mubr.f32.gmra.mrb[0].mxu0 %v255
      %v368 = vpop.f32.mrb[0].mxu0
      %v369 = vadd.f32 0.0, %v368
      %v370 = vpop.f32.mrb[0].mxu0
      %371 = vdwg.mxu0
      %v372 = vadd.f32 %v206, %v324
      %v373 = vadd.f32 %v207, %v329
      %v374 = vadd.f32 %v208, %v334
      %v375 = vadd.f32 %v209, %v339
      %v376 = vadd.f32 %v210, %v344
      %v377 = vadd.f32 %v211, %v349
      %v378 = vadd.f32 %v212, %v354
      %v379 = vadd.f32 %v213, %v359
      %v380 = vadd.f32 %v214, %v364
      %v381 = vadd.f32 %v215, %v369
      %v382 = vxor.u32 %v372, 2147483648
      %v383 = vxor.u32 %v373, 2147483648
      %v384 = vxor.u32 %v374, 2147483648
      %v385 = vxor.u32 %v375, 2147483648
      %v386 = vxor.u32 %v376, 2147483648
      %v387 = vxor.u32 %v377, 2147483648
      %v388 = vxor.u32 %v378, 2147483648
      %v389 = vxor.u32 %v379, 2147483648
      %v390 = vmul.f32 %v382, 1.442695
      %v391 = vpow.pop %v390
      %v392 = vmul.f32 %v383, 1.442695
      %v393 = vpow.pop %v392
      %v394 = vmul.f32 %v384, 1.442695
      %v395 = vpow.pop %v394
      %v396 = vmul.f32 %v385, 1.442695
      %v397 = vpow.pop %v396
      %v398 = vmul.f32 %v386, 1.442695
      %v399 = vpow.pop %v398
      %v400 = vmul.f32 %v387, 1.442695
      %v401 = vpow.pop %v400
      %v402 = vmul.f32 %v388, 1.442695
      %v403 = vpow.pop %v402
      %v404 = vmul.f32 %v389, 1.442695
      %v405 = vpow.pop %v404
      %v406 = vadd.f32 %v391, 1.0
      %v407 = vadd.f32 %v393, 1.0
      %v408 = vadd.f32 %v395, 1.0
      %v409 = vadd.f32 %v397, 1.0
      %v410 = vadd.f32 %v399, 1.0
      %v411 = vadd.f32 %v401, 1.0
      %v412 = vadd.f32 %v403, 1.0
      %v413 = vadd.f32 %v405, 1.0
      %v414 = vrcp.pop %v406
      %v415 = vmul.f32 1.0, %v414
      %v416 = vrcp.pop %v407
      %v417 = vmul.f32 1.0, %v416
      %v418 = vrcp.pop %v408
      %v419 = vmul.f32 1.0, %v418
      %v420 = vrcp.pop %v409
      %v421 = vmul.f32 1.0, %v420
      %v422 = vrcp.pop %v410
      %v423 = vmul.f32 1.0, %v422
      %v424 = vrcp.pop %v411
      %v425 = vmul.f32 1.0, %v424
      %v426 = vrcp.pop %v412
      %v427 = vmul.f32 1.0, %v426
      %v428 = vrcp.pop %v413
      %v429 = vmul.f32 1.0, %v428
      %v430 = vtanh.pop %v380
      %v431 = vtanh.pop %v381
      %v432 = vld [vmem:[%s179] sm:$0x1]
      %v433 = vmul.f32 %v415, %v430
      %v434 = vmul.f32 %v417, %v431
      %v435 = vmul.f32 %v419, %v196
      %v436 = vmul.f32 %v421, %v197
      %v437 = vadd.f32 %v433, %v435
      %v438 = vadd.f32 %v434, %v436
      %441 = vrot.lane.b32.xlu0 %v196, 126
      %v442 = vpop.permute.xlu0 %441
      %443 = vrot.lane.b32.xlu0 %v197, 126
      %v444 = vpop.permute.xlu0 %443
      %v447 = vmul.f32 %v423, %v442
      %v448 = vmul.f32 %v425, %v444
      %v449 = vadd.f32 %v437, %v447
      %v450 = vadd.f32 %v438, %v448
      %v452 = vlaneseq
      %v453 = vshrl.u32 %v452, 7
      %v454 = vsub.s32 0, %v453
      %v455 = vrot.slane %v432, %v454
      %v457 = vmul.f32 %v449, %v455
      %v458 = vmul.f32 %v450, %v455
      %v459 = vtanh.pop %v457
      %v460 = vtanh.pop %v458
      %v461 = vmul.f32 %v427, %v459
      %v462 = vmul.f32 %v429, %v460
      %vm463 = vcmask 130048
      %464 = vst.msk [vmem:[%s184] sm:$0xff] %vm463, %v461
      %465 = vst.msk [vmem:[%s184 + $0x8] sm:$0xff] %vm463, %v462
      %468 = vrot.lane.b32.xlu0 %v461, 2
      %v469 = vpop.permute.xlu0 %468
      %470 = vrot.lane.b32.xlu0 %v462, 2
      %v471 = vpop.permute.xlu0 %470
      %vm474 = vcmask 146448
      %475 = vst.msk [vmem:[#allocation2] sm:$0xff] %vm474, %v469
      %476 = vst.msk [vmem:[#allocation2 + $0x8] sm:$0xff] %vm474, %v471
      %479 = vrot.lane.b32.xlu0 %v457, 2
      %v480 = vpop.permute.xlu0 %479
      %481 = vrot.lane.b32.xlu0 %v458, 2
      %v482 = vpop.permute.xlu0 %481
      %485 = vst.msk [vmem:[#allocation3] sm:$0xff] %vm474, %v480
      %486 = vst.msk [vmem:[#allocation3 + $0x8] sm:$0xff] %vm474, %v482
      %p487 = scmp.lt.s32.totalorder %s14, 14
      %s488 = scalar_select %p487, %s14, 14
      %s489 = smul.addr %s488, 2
      %s490 = smul.addr %s489, 8
      %s491 = scalar_lea.vmem %s3, %s490
      // Predicated region
      $region37: #{multi_mdlstm_forward.3} parent=31 // pred_check
        %p492 = pneg %p105
      $region38: #{multi_mdlstm_forward.3} parent=31 // pred_check_branch
        %494 = sbr.rel (%p492) target = $region40
      $region39: #{multi_mdlstm_forward.3} parent=31 // pred_region
        _
      $region40: #{multi_mdlstm_forward.3} parent=31 // pred_fallthru
        _
    $region32: #{multi_mdlstm_forward.3} parent=5 // pred_fallthru
      _
    %p495 = scmp.le.s32.totalorder 2, %s9
    // Predicated region
    $region41: #{multi_mdlstm_forward.3} parent=5 // pred_check
      %p496 = pneg %p495
    $region42: #{multi_mdlstm_forward.3} parent=5 // pred_check_branch
      %498 = sbr.rel (%p496) target = $region44
    $region43: #{multi_mdlstm_forward.3} parent=5 // pred_region
      %s499 = ssub.s32 %s9, 2
      // Predicated region
      $region45: #{multi_mdlstm_forward.3} parent=43 // pred_check
        %p500 = pneg %p111
      $region46: #{multi_mdlstm_forward.3} parent=43 // pred_check_branch
        %502 = sbr.rel (%p500) target = $region48
      $region47: #{multi_mdlstm_forward.3} parent=43 // pred_region
        %p503 = scmp.lt.s32.totalorder %s15, 14
        %s504 = scalar_select %p503, %s15, 14
        %s505 = smul.addr %s504, 2
        %s506 = smul.addr %s505, 8
        %s507 = scalar_lea.vmem %s3, %s506
      $region48: #{multi_mdlstm_forward.3} parent=43 // pred_fallthru
        _
    $region44: #{multi_mdlstm_forward.3} parent=5 // pred_fallthru
      _
  $region6: #{multi_mdlstm_forward.3} parent=0 // loop_footer
    %s13 = sadd.s32 1, %s9
  $region7: #{multi_mdlstm_forward.3} parent=0 // loop_footer_branch
    %8 = sbr.rel target = $region3
  $region8: #{multi_mdlstm_forward.3} parent=0 // loop_exit
    _

// kernel: multi_mdlstm_forward.4
$region0: #{multi_mdlstm_forward.4}
  #allocation0 [shape = 'u32[]', space=smem, size = 0x4, offset = 0x4, fixed_abs, tag = 'smem constant byte address 0x4 - core index']
  #allocation1 [shape = 'u32[144,128]{1,0:T(1,128)}', space=vmem, size = 0x12000, scoped, tag = 'internal scratch']
  #allocation2 [shape = 'f32[32,18]{1,0:T(8,128)}', space=vmem, size = 0x4000, scoped, tag = 'scratch operand']
  #allocation3 [shape = 'f32[32,18]{1,0:T(8,128)}', space=vmem, size = 0x4000, scoped, tag = 'scratch operand']
  %s0 = inlined_call_operand.vmem [shape: f32[15,160,16], index: 0, kind: input, shape index: {}]
  %s1 = inlined_call_operand.vmem [shape: f32[15,1,16], index: 1, kind: input, shape index: {}]
  %s2 = inlined_call_operand.vmem [shape: f32[160,64], index: 2, kind: input, shape index: {}]
  %s3 = inlined_call_operand.vmem [shape: f32[15,32,16], index: 3, kind: output, shape index: {}]
  %s4 = sld [smem:[#allocation0]]
  $region49: #{multi_mdlstm_forward.4} parent=0
    _
  %s6 = ssub.s32 1, %s4
  %s7 = scalar_select 0, %s6, %s4
  loop: start=0, step=1, limit=17
  $region2: #{multi_mdlstm_forward.4} parent=0 // loop_pre_header
    _
  $region3: #{multi_mdlstm_forward.4} parent=0 // loop_header
    %s9 = sphi 0, %s13
    %p10 = scmp.ge.s32.totalorder %s9, 17
    %s19 = sphi 0, %s21
    %s22 = sphi 0, %s19
    %s23 = sphi 0, %s22
    %s39 = sphi 0, %s23
    %s45 = sphi 0, %s47
    %s48 = sphi 0, %s45
    %s49 = sphi 0, %s48
    %s65 = sphi 0, %s49
    %s69 = sphi 0, %s69
    %s71 = sphi 0, %s69
    %s72 = sphi 0, %s71
    %s86 = sphi 0, %s72
    %s92 = sphi 0, %s94
    %s95 = sphi 0, %s92
    %s96 = sphi 0, %s95
    %s112 = sphi 0, %s96
  $region4: #{multi_mdlstm_forward.4} parent=0 // loop_header_branch
    %12 = sbr.rel (%p10) target = $region8
  $region5: #{multi_mdlstm_forward.4} parent=0 // loop_body
    %s14 = ssub.s32 %s9, 1
    %s15 = ssub.s32 %s9, 2
    %s16 = sadd.s32 %s9, 1
    %s17 = ssub.s32 %s9, %s16
    %p18 = scmp.eq.s32.totalorder %s17, 0
    %s20 = sadd.s32 %s19, 1
    %s21 = scalar_select %p18, %s19, %s20
    %p24 = pneg %p18
    %p25 = scmp.eq.s32.totalorder %s9, 14
    %p26 = por %p24, %p25
    %p27 = scmp.ne.s32.totalorder %s19, %s22
    %p28 = scmp.eq.s32.totalorder %s9, 0
    %p29 = por %p27, %p28
    %p30 = scmp.ne.s32.totalorder %s19, %s22
    %p31 = scmp.eq.s32.totalorder %s14, 14
    %p32 = por %p30, %p31
    %p33 = scmp.ne.s32.totalorder %s22, %s23
    %p34 = scmp.eq.s32.totalorder %s14, 0
    %p35 = por %p33, %p34
    %p36 = scmp.ne.s32.totalorder %s22, %s23
    %p37 = scmp.eq.s32.totalorder %s15, 14
    %p38 = por %p36, %p37
    %p40 = scmp.ne.s32.totalorder %s23, %s39
    %p41 = scmp.eq.s32.totalorder %s15, 0
    %p42 = por %p40, %p41
    %s43 = ssub.s32 %s9, %s16
    %p44 = scmp.eq.s32.totalorder %s43, 0
    %s46 = sadd.s32 %s45, 1
    %s47 = scalar_select %p44, %s45, %s46
    %p50 = pneg %p44
    %p51 = scmp.eq.s32.totalorder %s9, 14
    %p52 = por %p50, %p51
    %p53 = scmp.ne.s32.totalorder %s45, %s48
    %p54 = scmp.eq.s32.totalorder %s9, 0
    %p55 = por %p53, %p54
    %p56 = scmp.ne.s32.totalorder %s45, %s48
    %p57 = scmp.eq.s32.totalorder %s14, 14
    %p58 = por %p56, %p57
    %p59 = scmp.ne.s32.totalorder %s48, %s49
    %p60 = scmp.eq.s32.totalorder %s14, 0
    %p61 = por %p59, %p60
    %p62 = scmp.ne.s32.totalorder %s48, %s49
    %p63 = scmp.eq.s32.totalorder %s15, 14
    %p64 = por %p62, %p63
    %p66 = scmp.ne.s32.totalorder %s49, %s65
    %p67 = scmp.eq.s32.totalorder %s15, 0
    %p68 = por %p66, %p67
    %s70 = sadd.s32 %s69, 1
    %p73 = scmp.eq.s32.totalorder %s9, 14
    %p74 = scmp.ne.s32.totalorder %s69, %s71
    %p75 = scmp.eq.s32.totalorder %s9, 0
    %p76 = por %p74, %p75
    %p77 = scmp.ne.s32.totalorder %s69, %s71
    %p78 = scmp.eq.s32.totalorder %s14, 14
    %p79 = por %p77, %p78
    %p80 = scmp.ne.s32.totalorder %s71, %s72
    %p81 = scmp.eq.s32.totalorder %s14, 0
    %p82 = por %p80, %p81
    %p83 = scmp.ne.s32.totalorder %s71, %s72
    %p84 = scmp.eq.s32.totalorder %s15, 14
    %p85 = por %p83, %p84
    %p87 = scmp.ne.s32.totalorder %s72, %s86
    %p88 = scmp.eq.s32.totalorder %s15, 0
    %p89 = por %p87, %p88
    %s90 = ssub.s32 %s9, %s16
    %p91 = scmp.eq.s32.totalorder %s90, 0
    %s93 = sadd.s32 %s92, 1
    %s94 = scalar_select %p91, %s92, %s93
    %p97 = pneg %p91
    %p98 = scmp.eq.s32.totalorder %s9, 14
    %p99 = por %p97, %p98
    %p100 = scmp.ne.s32.totalorder %s92, %s95
    %p101 = scmp.eq.s32.totalorder %s9, 0
    %p102 = por %p100, %p101
    %p103 = scmp.ne.s32.totalorder %s92, %s95
    %p104 = scmp.eq.s32.totalorder %s14, 14
    %p105 = por %p103, %p104
    %p106 = scmp.ne.s32.totalorder %s95, %s96
    %p107 = scmp.eq.s32.totalorder %s14, 0
    %p108 = por %p106, %p107
    %p109 = scmp.ne.s32.totalorder %s95, %s96
    %p110 = scmp.eq.s32.totalorder %s15, 14
    %p111 = por %p109, %p110
    %p113 = scmp.ne.s32.totalorder %s96, %s112
    %p114 = scmp.eq.s32.totalorder %s15, 0
    %p115 = por %p113, %p114
    %p116 = scmp.le.s32.totalorder 1, %s9
    %p117 = scmp.lt.s32.totalorder %s9, 16
    %p118 = pnand %p116, %p117
    %p119 = pneg %p118
    // Predicated region
    $region9: #{multi_mdlstm_forward.4} parent=5 // pred_check
      _
    $region10: #{multi_mdlstm_forward.4} parent=5 // pred_check_branch
      %121 = sbr.rel (%p118) target = $region12
    $region11: #{multi_mdlstm_forward.4} parent=5 // pred_region
      %s122 = ssub.s32 %s9, 1
      // Predicated region
      $region13: #{multi_mdlstm_forward.4} parent=11 // pred_check
        %p123 = pneg %p82
      $region14: #{multi_mdlstm_forward.4} parent=11 // pred_check_branch
        %125 = sbr.rel (%p123) target = $region16
      $region15: #{multi_mdlstm_forward.4} parent=11 // pred_region
        _
      $region16: #{multi_mdlstm_forward.4} parent=11 // pred_fallthru
        _
    $region12: #{multi_mdlstm_forward.4} parent=5 // pred_fallthru
      _
    %p126 = scmp.lt.s32.totalorder %s9, 15
    // Predicated region
    $region17: #{multi_mdlstm_forward.4} parent=5 // pred_check
      %p127 = pneg %p126
    $region18: #{multi_mdlstm_forward.4} parent=5 // pred_check_branch
      %129 = sbr.rel (%p127) target = $region20
    $region19: #{multi_mdlstm_forward.4} parent=5 // pred_region
      // Predicated region
      $region21: #{multi_mdlstm_forward.4} parent=19 // pred_check
        %p130 = pneg %p29
      $region22: #{multi_mdlstm_forward.4} parent=19 // pred_check_branch
        %132 = sbr.rel (%p130) target = $region24
      $region23: #{multi_mdlstm_forward.4} parent=19 // pred_region
        %p133 = scmp.lt.s32.totalorder %s9, 14
        %s134 = scalar_select %p133, %s9, 14
        %s135 = smul.addr %s134, 20
        %s136 = smul.addr %s135, 8
        %s137 = scalar_lea.vmem %s0, %s136
      $region24: #{multi_mdlstm_forward.4} parent=19 // pred_fallthru
        _
      // Predicated region
      $region25: #{multi_mdlstm_forward.4} parent=19 // pred_check
        %p138 = pneg %p55
      $region26: #{multi_mdlstm_forward.4} parent=19 // pred_check_branch
        %140 = sbr.rel (%p138) target = $region28
      $region27: #{multi_mdlstm_forward.4} parent=19 // pred_region
        %p141 = scmp.lt.s32.totalorder %s9, 14
        %s142 = scalar_select %p141, %s9, 14
        %s143 = scalar_lea.vmem %s1, %s142
      $region28: #{multi_mdlstm_forward.4} parent=19 // pred_fallthru
        _
    $region20: #{multi_mdlstm_forward.4} parent=5 // pred_fallthru
      _
    %p144 = scmp.le.s32.totalorder 1, %s9
    %p145 = scmp.lt.s32.totalorder %s9, 16
    %p146 = pnand %p144, %p145
    %p147 = pneg %p146
    // Predicated region
    $region29: #{multi_mdlstm_forward.4} parent=5 // pred_check
      _
    $region30: #{multi_mdlstm_forward.4} parent=5 // pred_check_branch
      %149 = sbr.rel (%p146) target = $region32
    $region31: #{multi_mdlstm_forward.4} parent=5 // pred_region
      %s150 = ssub.s32 %s9, 1
      %p151 = scmp.lt.s32.totalorder %s14, 14
      %s152 = scalar_select %p151, %s14, 14
      %s153 = smul.addr %s152, 20
      %s154 = smul.addr %s153, 8
      %s155 = scalar_lea.vmem %s0, %s154
      %p156 = pneg %p35
      %p157 = pneg %p32
      %p158 = scmp.lt.s32.totalorder %s14, 14
      %s159 = scalar_select %p158, %s14, 14
      %s160 = scalar_lea.vmem %s1, %s159
      %p161 = pneg %p61
      %p162 = pneg %p58
      %p163 = pneg %p82
      %p164 = pneg %p79
      %p165 = pneg %p108
      %p166 = pneg %p105
      %p167 = scmp.lt.s32.totalorder %s14, 14
      %s168 = scalar_select %p167, %s14, 14
      %s169 = smul.addr %s168, 4
      %s170 = smul.addr %s169, 8
      %s171 = scalar_lea.vmem %s3, %s170
      %p172 = scmp.lt.s32.totalorder %s14, 14
      %s173 = scalar_select %p172, %s14, 14
      %s174 = smul.addr %s173, 20
      %s175 = smul.addr %s174, 8
      %s176 = scalar_lea.vmem %s0, %s175
      %p177 = scmp.lt.s32.totalorder %s14, 14
      %s178 = scalar_select %p177, %s14, 14
      %s179 = scalar_lea.vmem %s1, %s178
      %p180 = scmp.lt.s32.totalorder %s14, 14
      %s181 = scalar_select %p180, %s14, 14
      %s182 = smul.addr %s181, 4
      %s183 = smul.addr %s182, 8
      %s184 = scalar_lea.vmem %s3, %s183
      %p185 = scmp.eq.s32.totalorder %s14, 0
      // Predicated region
      $region33: #{multi_mdlstm_forward.4} parent=31 // pred_check
        %p186 = pneg %p185
      $region34: #{multi_mdlstm_forward.4} parent=31 // pred_check_branch
        %188 = sbr.rel (%p186) target = $region36
      $region35: #{multi_mdlstm_forward.4} parent=31 // pred_region
        %vm189 = vcmask 146432
        %190 = vst.msk [vmem:[#allocation2] sm:$0xff] %vm189, 0.0
        %191 = vst.msk [vmem:[#allocation2 + $0x8] sm:$0xff] %vm189, 0.0
        %192 = vst.msk [vmem:[#allocation2 + $0x10] sm:$0xff] %vm189, 0.0
        %193 = vst.msk [vmem:[#allocation2 + $0x18] sm:$0xff] %vm189, 0.0
        %194 = vst.msk [vmem:[#allocation3] sm:$0xff] %vm189, 0.0
        %195 = vst.msk [vmem:[#allocation3 + $0x8] sm:$0xff] %vm189, 0.0
        %196 = vst.msk [vmem:[#allocation3 + $0x10] sm:$0xff] %vm189, 0.0
        %197 = vst.msk [vmem:[#allocation3 + $0x18] sm:$0xff] %vm189, 0.0
      $region36: #{multi_mdlstm_forward.4} parent=31 // pred_fallthru
        _
      %v198 = vld [vmem:[#allocation2] sm:$0xff]
      %v199 = vld [vmem:[#allocation2 + $0x8] sm:$0xff]
      %v200 = vld [vmem:[#allocation2 + $0x10] sm:$0xff]
      %v201 = vld [vmem:[#allocation2 + $0x18] sm:$0xff]
      %v202 = vld [vmem:[#allocation3] sm:$0xff]
      %v203 = vld [vmem:[#allocation3 + $0x8] sm:$0xff]
      %v204 = vld [vmem:[#allocation3 + $0x10] sm:$0xff]
      %v205 = vld [vmem:[#allocation3 + $0x18] sm:$0xff]
      %210 = vrot.lane.b32.xlu0 %v198, 126
      %v211 = vpop.permute.xlu0 %210
      %212 = vrot.lane.b32.xlu0 %v199, 126
      %v213 = vpop.permute.xlu0 %212
      %214 = vrot.lane.b32.xlu0 %v200, 126
      %v215 = vpop.permute.xlu0 %214
      %216 = vrot.lane.b32.xlu0 %v201, 126
      %v217 = vpop.permute.xlu0 %216
      %v222 = vld [vmem:[%s176] sm:$0xff]
      %v223 = vld [vmem:[%s176 + $0x8] sm:$0xff]
      %v224 = vld [vmem:[%s176 + $0x10] sm:$0xff]
      %v225 = vld [vmem:[%s176 + $0x18] sm:$0xff]
      %v226 = vld [vmem:[%s176 + $0x20] sm:$0xff]
      %v227 = vld [vmem:[%s176 + $0x28] sm:$0xff]
      %v228 = vld [vmem:[%s176 + $0x30] sm:$0xff]
      %v229 = vld [vmem:[%s176 + $0x38] sm:$0xff]
      %v230 = vld [vmem:[%s176 + $0x40] sm:$0xff]
      %v231 = vld [vmem:[%s176 + $0x48] sm:$0xff]
      %v232 = vld [vmem:[%s176 + $0x50] sm:$0xff]
      %v233 = vld [vmem:[%s176 + $0x58] sm:$0xff]
      %v234 = vld [vmem:[%s176 + $0x60] sm:$0xff]
      %v235 = vld [vmem:[%s176 + $0x68] sm:$0xff]
      %v236 = vld [vmem:[%s176 + $0x70] sm:$0xff]
      %v237 = vld [vmem:[%s176 + $0x78] sm:$0xff]
      %v238 = vld [vmem:[%s176 + $0x80] sm:$0xff]
      %v239 = vld [vmem:[%s176 + $0x88] sm:$0xff]
      %v240 = vld [vmem:[%s176 + $0x90] sm:$0xff]
      %v241 = vld [vmem:[%s176 + $0x98] sm:$0xff]
      %v242 = vld [vmem:[%s2] sm:$0xff]
      %v243 = vld [vmem:[%s2 + $0x8] sm:$0xff]
      %v244 = vld [vmem:[%s2 + $0x10] sm:$0xff]
      %v245 = vld [vmem:[%s2 + $0x18] sm:$0xff]
      %v246 = vld [vmem:[%s2 + $0x20] sm:$0xff]
      %v247 = vld [vmem:[%s2 + $0x28] sm:$0xff]
      %v248 = vld [vmem:[%s2 + $0x30] sm:$0xff]
      %v249 = vld [vmem:[%s2 + $0x38] sm:$0xff]
      %v250 = vld [vmem:[%s2 + $0x40] sm:$0xff]
      %v251 = vld [vmem:[%s2 + $0x48] sm:$0xff]
      %v252 = vld [vmem:[%s2 + $0x50] sm:$0xff]
      %v253 = vld [vmem:[%s2 + $0x58] sm:$0xff]
      %v254 = vld [vmem:[%s2 + $0x60] sm:$0xff]
      %v255 = vld [vmem:[%s2 + $0x68] sm:$0xff]
      %v256 = vld [vmem:[%s2 + $0x70] sm:$0xff]
      %v257 = vld [vmem:[%s2 + $0x78] sm:$0xff]
      %v258 = vld [vmem:[%s2 + $0x80] sm:$0xff]
      %v259 = vld [vmem:[%s2 + $0x88] sm:$0xff]
      %v260 = vld [vmem:[%s2 + $0x90] sm:$0xff]
      %v261 = vld [vmem:[%s2 + $0x98] sm:$0xff]
      %vm262 = vcmask 523264
      %v264 = vsel %vm262, %v242, 0
      %v267 = vsel %vm262, %v243, 0
      %v270 = vsel %vm262, %v244, 0
      %v273 = vsel %vm262, %v245, 0
      %v276 = vsel %vm262, %v246, 0
      %v279 = vsel %vm262, %v247, 0
      %v282 = vsel %vm262, %v248, 0
      %v285 = vsel %vm262, %v249, 0
      %v288 = vsel %vm262, %v250, 0
      %v291 = vsel %vm262, %v251, 0
      %v294 = vsel %vm262, %v252, 0
      %v297 = vsel %vm262, %v253, 0
      %v300 = vsel %vm262, %v254, 0
      %v303 = vsel %vm262, %v255, 0
      %v306 = vsel %vm262, %v256, 0
      %v309 = vsel %vm262, %v257, 0
      %v312 = vsel %vm262, %v258, 0
      %v315 = vsel %vm262, %v259, 0
      %v318 = vsel %vm262, %v260, 0
      %v321 = vsel %vm262, %v261, 0
      %323 = vmatprep.subr.mxu0 0.0
      %324 = vmatpush1.msra.mxu0 %v198
      %325 = vmatprep.subr.mxu0 0.0
      %326 = vmatpush1.msra.mxu0 %v199
      %327 = vmatprep.subr.mxu0 0.0
      %328 = vmatpush1.msra.mxu0 %v200
      %329 = vmatprep.subr.mxu0 0.0
      %330 = vmatpush1.msra.mxu0 %v201
      %331 = vmatprep.subr.mxu0 0.0
      %332 = vmatpush1.msra.mxu0 %v211
      %333 = vmatprep.subr.mxu0 0.0
      %334 = vmatpush1.msra.mxu0 %v213
      %335 = vmatprep.subr.mxu0 0.0
      %336 = vmatpush1.msra.mxu0 %v215
      %337 = vmatprep.subr.mxu0 0.0
      %338 = vmatpush1.msra.mxu0 %v217
      %339 = vmatprep.subr.mxu0 0.0
      %340 = vmatpush1.msra.mxu0 0.0
      %341 = vmatprep.subr.mxu0 0.0
      %342 = vmatpush1.msra.mxu0 0.0
      %343 = vmatprep.subr.mxu0 0.0
      %344 = vmatpush1.msra.mxu0 0.0
      %345 = vmatprep.subr.mxu0 0.0
      %346 = vmatpush1.msra.mxu0 0.0
      %347 = vmatprep.subr.mxu0 0.0
      %348 = vmatpush1.msra.mxu0 0.0
      %349 = vmatprep.subr.mxu0 0.0
      %350 = vmatpush1.msra.mxu0 0.0
      %351 = vmatprep.subr.mxu0 0.0
      %352 = vmatpush1.msra.mxu0 0.0
      %353 = vmatprep.subr.mxu0 0.0
      %354 = vmatpush1.msra.mxu0 0.0
      %355 = vmatprep.subr.mxu0 0.0
      %356 = vmatpush1.msra.mxu0 0.0
      %357 = vmatprep.subr.mxu0 0.0
      %358 = vmatpush1.msra.mxu0 0.0
      %359 = vmatprep.subr.mxu0 0.0
      %360 = vmatpush1.msra.mxu0 0.0
      %361 = vmatprep.subr.mxu0 0.0
      %362 = vmatpush1.msra.mxu0 0.0
      %363 = vmatprep.subr.mxu0 0.0
      %364 = vmatpush1.msra.mxu0 0.0
      %365 = vmatprep.subr.mxu0 0.0
      %366 = vmatpush1.msra.mxu0 0.0
      %367 = vmatprep.subr.mxu0 0.0
      %368 = vmatpush1.msra.mxu0 0.0
      %369 = vmatprep.subr.mxu0 0.0
      %370 = vmatpush1.msra.mxu0 0.0
      %371 = vmatprep.subr.mxu0 0.0
      %372 = vmatpush1.msra.mxu0 0.0
      %373 = vmatprep.subr.mxu0 0.0
      %374 = vmatpush1.msra.mxu0 0.0
      %375 = vmatprep.subr.mxu0 0.0
      %376 = vmatpush1.msra.mxu0 0.0
      %377 = vmatprep.subr.mxu0 0.0
      %378 = vmatpush1.msra.mxu0 0.0
      %379 = vmatprep.subr.mxu0 0.0
      %380 = vmatpush1.msra.mxu0 0.0
      %381 = vmatprep.subr.mxu0 0.0
      %382 = vmatpush1.msra.mxu0 0.0
      %383 = vmatprep.subr.mxu0 0.0
      %384 = vmatpush1.msra.mxu0 0.0
      %385 = vmatprep.subr.mxu0 0.0
      %386 = vmatpush1.msra.mxu0 0.0
      %387 = vmatprep.mubr.f32.mxu0 0.0
      %388 = vmatmul.mubr.f32.gmra.mrb[0].mxu0 %v264
      %v389 = vpop.f32.mrb[0].mxu0
      %v390 = vadd.f32 0.0, %v389
      %v391 = vpop.f32.mrb[0].mxu0
      %392 = vmatprep.mubr.f32.mxu0 0.0
      %393 = vmatmul.mubr.f32.gmra.mrb[0].mxu0 %v267
      %v394 = vpop.f32.mrb[0].mxu0
      %v395 = vadd.f32 0.0, %v394
      %v396 = vpop.f32.mrb[0].mxu0
      %397 = vmatprep.mubr.f32.mxu0 0.0
      %398 = vmatmul.mubr.f32.gmra.mrb[0].mxu0 %v270
      %v399 = vpop.f32.mrb[0].mxu0
      %v400 = vadd.f32 0.0, %v399
      %v401 = vpop.f32.mrb[0].mxu0
      %402 = vmatprep.mubr.f32.mxu0 0.0
      %403 = vmatmul.mubr.f32.gmra.mrb[0].mxu0 %v273
      %v404 = vpop.f32.mrb[0].mxu0
      %v405 = vadd.f32 0.0, %v404
      %v406 = vpop.f32.mrb[0].mxu0
      %407 = vmatprep.mubr.f32.mxu0 0.0
      %408 = vmatmul.mubr.f32.gmra.mrb[0].mxu0 %v276
      %v409 = vpop.f32.mrb[0].mxu0
      %v410 = vadd.f32 0.0, %v409
      %v411 = vpop.f32.mrb[0].mxu0
      %412 = vmatprep.mubr.f32.mxu0 0.0
      %413 = vmatmul.mubr.f32.gmra.mrb[0].mxu0 %v279
      %v414 = vpop.f32.mrb[0].mxu0
      %v415 = vadd.f32 0.0, %v414
      %v416 = vpop.f32.mrb[0].mxu0
      %417 = vmatprep.mubr.f32.mxu0 0.0
      %418 = vmatmul.mubr.f32.gmra.mrb[0].mxu0 %v282
      %v419 = vpop.f32.mrb[0].mxu0
      %v420 = vadd.f32 0.0, %v419
      %v421 = vpop.f32.mrb[0].mxu0
      %422 = vmatprep.mubr.f32.mxu0 0.0
      %423 = vmatmul.mubr.f32.gmra.mrb[0].mxu0 %v285
      %v424 = vpop.f32.mrb[0].mxu0
      %v425 = vadd.f32 0.0, %v424
      %v426 = vpop.f32.mrb[0].mxu0
      %427 = vmatprep.mubr.f32.mxu0 0.0
      %428 = vmatmul.mubr.f32.gmra.mrb[0].mxu0 %v288
      %v429 = vpop.f32.mrb[0].mxu0
      %v430 = vadd.f32 0.0, %v429
      %v431 = vpop.f32.mrb[0].mxu0
      %432 = vmatprep.mubr.f32.mxu0 0.0
      %433 = vmatmul.mubr.f32.gmra.mrb[0].mxu0 %v291
      %v434 = vpop.f32.mrb[0].mxu0
      %v435 = vadd.f32 0.0, %v434
      %v436 = vpop.f32.mrb[0].mxu0
      %437 = vmatprep.mubr.f32.mxu0 0.0
      %438 = vmatmul.mubr.f32.gmra.mrb[0].mxu0 %v294
      %v439 = vpop.f32.mrb[0].mxu0
      %v440 = vadd.f32 0.0, %v439
      %v441 = vpop.f32.mrb[0].mxu0
      %442 = vmatprep.mubr.f32.mxu0 0.0
      %443 = vmatmul.mubr.f32.gmra.mrb[0].mxu0 %v297
      %v444 = vpop.f32.mrb[0].mxu0
      %v445 = vadd.f32 0.0, %v444
      %v446 = vpop.f32.mrb[0].mxu0
      %447 = vmatprep.mubr.f32.mxu0 0.0
      %448 = vmatmul.mubr.f32.gmra.mrb[0].mxu0 %v300
      %v449 = vpop.f32.mrb[0].mxu0
      %v450 = vadd.f32 0.0, %v449
      %v451 = vpop.f32.mrb[0].mxu0
      %452 = vmatprep.mubr.f32.mxu0 0.0
      %453 = vmatmul.mubr.f32.gmra.mrb[0].mxu0 %v303
      %v454 = vpop.f32.mrb[0].mxu0
      %v455 = vadd.f32 0.0, %v454
      %v456 = vpop.f32.mrb[0].mxu0
      %457 = vmatprep.mubr.f32.mxu0 0.0
      %458 = vmatmul.mubr.f32.gmra.mrb[0].mxu0 %v306
      %v459 = vpop.f32.mrb[0].mxu0
      %v460 = vadd.f32 0.0, %v459
      %v461 = vpop.f32.mrb[0].mxu0
      %462 = vmatprep.mubr.f32.mxu0 0.0
      %463 = vmatmul.mubr.f32.gmra.mrb[0].mxu0 %v309
      %v464 = vpop.f32.mrb[0].mxu0
      %v465 = vadd.f32 0.0, %v464
      %v466 = vpop.f32.mrb[0].mxu0
      %467 = vmatprep.mubr.f32.mxu0 0.0
      %468 = vmatmul.mubr.f32.gmra.mrb[0].mxu0 %v312
      %v469 = vpop.f32.mrb[0].mxu0
      %v470 = vadd.f32 0.0, %v469
      %v471 = vpop.f32.mrb[0].mxu0
      %472 = vmatprep.mubr.f32.mxu0 0.0
      %473 = vmatmul.mubr.f32.gmra.mrb[0].mxu0 %v315
      %v474 = vpop.f32.mrb[0].mxu0
      %v475 = vadd.f32 0.0, %v474
      %v476 = vpop.f32.mrb[0].mxu0
      %477 = vmatprep.mubr.f32.mxu0 0.0
      %478 = vmatmul.mubr.f32.gmra.mrb[0].mxu0 %v318
      %v479 = vpop.f32.mrb[0].mxu0
      %v480 = vadd.f32 0.0, %v479
      %v481 = vpop.f32.mrb[0].mxu0
      %482 = vmatprep.mubr.f32.mxu0 0.0
      %483 = vmatmul.mubr.f32.gmra.mrb[0].mxu0 %v321
      %v484 = vpop.f32.mrb[0].mxu0
      %v485 = vadd.f32 0.0, %v484
      %v486 = vpop.f32.mrb[0].mxu0
      %487 = vdwg.mxu0
      %v488 = vadd.f32 %v222, %v390
      %v489 = vadd.f32 %v223, %v395
      %v490 = vadd.f32 %v224, %v400
      %v491 = vadd.f32 %v225, %v405
      %v492 = vadd.f32 %v226, %v410
      %v493 = vadd.f32 %v227, %v415
      %v494 = vadd.f32 %v228, %v420
      %v495 = vadd.f32 %v229, %v425
      %v496 = vadd.f32 %v230, %v430
      %v497 = vadd.f32 %v231, %v435
      %v498 = vadd.f32 %v232, %v440
      %v499 = vadd.f32 %v233, %v445
      %v500 = vadd.f32 %v234, %v450
      %v501 = vadd.f32 %v235, %v455
      %v502 = vadd.f32 %v236, %v460
      %v503 = vadd.f32 %v237, %v465
      %v504 = vadd.f32 %v238, %v470
      %v505 = vadd.f32 %v239, %v475
      %v506 = vadd.f32 %v240, %v480
      %v507 = vadd.f32 %v241, %v485
      %v508 = vxor.u32 %v488, 2147483648
      %v509 = vxor.u32 %v489, 2147483648
      %v510 = vxor.u32 %v490, 2147483648
      %v511 = vxor.u32 %v491, 2147483648
      %v512 = vxor.u32 %v492, 2147483648
      %v513 = vxor.u32 %v493, 2147483648
      %v514 = vxor.u32 %v494, 2147483648
      %v515 = vxor.u32 %v495, 2147483648
      %v516 = vxor.u32 %v496, 2147483648
      %v517 = vxor.u32 %v497, 2147483648
      %v518 = vxor.u32 %v498, 2147483648
      %v519 = vxor.u32 %v499, 2147483648
      %v520 = vxor.u32 %v500, 2147483648
      %v521 = vxor.u32 %v501, 2147483648
      %v522 = vxor.u32 %v502, 2147483648
      %v523 = vxor.u32 %v503, 2147483648
      %v524 = vmul.f32 %v508, 1.442695
      %v525 = vpow.pop %v524
      %v526 = vmul.f32 %v509, 1.442695
      %v527 = vpow.pop %v526
      %v528 = vmul.f32 %v510, 1.442695
      %v529 = vpow.pop %v528
      %v530 = vmul.f32 %v511, 1.442695
      %v531 = vpow.pop %v530
      %v532 = vmul.f32 %v512, 1.442695
      %v533 = vpow.pop %v532
      %v534 = vmul.f32 %v513, 1.442695
      %v535 = vpow.pop %v534
      %v536 = vmul.f32 %v514, 1.442695
      %v537 = vpow.pop %v536
      %v538 = vmul.f32 %v515, 1.442695
      %v539 = vpow.pop %v538
      %v540 = vmul.f32 %v516, 1.442695
      %v541 = vpow.pop %v540
      %v542 = vmul.f32 %v517, 1.442695
      %v543 = vpow.pop %v542
      %v544 = vmul.f32 %v518, 1.442695
      %v545 = vpow.pop %v544
      %v546 = vmul.f32 %v519, 1.442695
      %v547 = vpow.pop %v546
      %v548 = vmul.f32 %v520, 1.442695
      %v549 = vpow.pop %v548
      %v550 = vmul.f32 %v521, 1.442695
      %v551 = vpow.pop %v550
      %v552 = vmul.f32 %v522, 1.442695
      %v553 = vpow.pop %v552
      %v554 = vmul.f32 %v523, 1.442695
      %v555 = vpow.pop %v554
      %v556 = vadd.f32 %v525, 1.0
      %v557 = vadd.f32 %v527, 1.0
      %v558 = vadd.f32 %v529, 1.0
      %v559 = vadd.f32 %v531, 1.0
      %v560 = vadd.f32 %v533, 1.0
      %v561 = vadd.f32 %v535, 1.0
      %v562 = vadd.f32 %v537, 1.0
      %v563 = vadd.f32 %v539, 1.0
      %v564 = vadd.f32 %v541, 1.0
      %v565 = vadd.f32 %v543, 1.0
      %v566 = vadd.f32 %v545, 1.0
      %v567 = vadd.f32 %v547, 1.0
      %v568 = vadd.f32 %v549, 1.0
      %v569 = vadd.f32 %v551, 1.0
      %v570 = vadd.f32 %v553, 1.0
      %v571 = vadd.f32 %v555, 1.0
      %v572 = vrcp.pop %v556
      %v573 = vmul.f32 1.0, %v572
      %v574 = vrcp.pop %v557
      %v575 = vmul.f32 1.0, %v574
      %v576 = vrcp.pop %v558
      %v577 = vmul.f32 1.0, %v576
      %v578 = vrcp.pop %v559
      %v579 = vmul.f32 1.0, %v578
      %v580 = vrcp.pop %v560
      %v581 = vmul.f32 1.0, %v580
      %v582 = vrcp.pop %v561
      %v583 = vmul.f32 1.0, %v582
      %v584 = vrcp.pop %v562
      %v585 = vmul.f32 1.0, %v584
      %v586 = vrcp.pop %v563
      %v587 = vmul.f32 1.0, %v586
      %v588 = vrcp.pop %v564
      %v589 = vmul.f32 1.0, %v588
      %v590 = vrcp.pop %v565
      %v591 = vmul.f32 1.0, %v590
      %v592 = vrcp.pop %v566
      %v593 = vmul.f32 1.0, %v592
      %v594 = vrcp.pop %v567
      %v595 = vmul.f32 1.0, %v594
      %v596 = vrcp.pop %v568
      %v597 = vmul.f32 1.0, %v596
      %v598 = vrcp.pop %v569
      %v599 = vmul.f32 1.0, %v598
      %v600 = vrcp.pop %v570
      %v601 = vmul.f32 1.0, %v600
      %v602 = vrcp.pop %v571
      %v603 = vmul.f32 1.0, %v602
      %v604 = vtanh.pop %v504
      %v605 = vtanh.pop %v505
      %v606 = vtanh.pop %v506
      %v607 = vtanh.pop %v507
      %v608 = vld [vmem:[%s179] sm:$0x1]
      %v609 = vmul.f32 %v573, %v604
      %v610 = vmul.f32 %v575, %v605
      %v611 = vmul.f32 %v577, %v606
      %v612 = vmul.f32 %v579, %v607
      %v613 = vmul.f32 %v581, %v202
      %v614 = vmul.f32 %v583, %v203
      %v615 = vmul.f32 %v585, %v204
      %v616 = vmul.f32 %v587, %v205
      %v617 = vadd.f32 %v609, %v613
      %v618 = vadd.f32 %v610, %v614
      %v619 = vadd.f32 %v611, %v615
      %v620 = vadd.f32 %v612, %v616
      %625 = vrot.lane.b32.xlu0 %v202, 126
      %v626 = vpop.permute.xlu0 %625
      %627 = vrot.lane.b32.xlu0 %v203, 126
      %v628 = vpop.permute.xlu0 %627
      %629 = vrot.lane.b32.xlu0 %v204, 126
      %v630 = vpop.permute.xlu0 %629
      %631 = vrot.lane.b32.xlu0 %v205, 126
      %v632 = vpop.permute.xlu0 %631
      %v637 = vmul.f32 %v589, %v626
      %v638 = vmul.f32 %v591, %v628
      %v639 = vmul.f32 %v593, %v630
      %v640 = vmul.f32 %v595, %v632
      %v641 = vadd.f32 %v617, %v637
      %v642 = vadd.f32 %v618, %v638
      %v643 = vadd.f32 %v619, %v639
      %v644 = vadd.f32 %v620, %v640
      %v646 = vlaneseq
      %v647 = vshrl.u32 %v646, 7
      %v648 = vsub.s32 0, %v647
      %v649 = vrot.slane %v608, %v648
      %v651 = vmul.f32 %v641, %v649
      %v652 = vmul.f32 %v642, %v649
      %v653 = vmul.f32 %v643, %v649
      %v654 = vmul.f32 %v644, %v649
      %v655 = vtanh.pop %v651
      %v656 = vtanh.pop %v652
      %v657 = vtanh.pop %v653
      %v658 = vtanh.pop %v654
      %v659 = vmul.f32 %v597, %v655
      %v660 = vmul.f32 %v599, %v656
      %v661 = vmul.f32 %v601, %v657
      %v662 = vmul.f32 %v603, %v658
      %vm663 = vcmask 130048
      %664 = vst.msk [vmem:[%s184] sm:$0xff] %vm663, %v659
      %665 = vst.msk [vmem:[%s184 + $0x8] sm:$0xff] %vm663, %v660
      %666 = vst.msk [vmem:[%s184 + $0x10] sm:$0xff] %vm663, %v661
      %667 = vst.msk [vmem:[%s184 + $0x18] sm:$0xff] %vm663, %v662
      %672 = vrot.lane.b32.xlu0 %v659, 2
      %v673 = vpop.permute.xlu0 %672
      %674 = vrot.lane.b32.xlu0 %v660, 2
      %v675 = vpop.permute.xlu0 %674
      %676 = vrot.lane.b32.xlu0 %v661, 2
      %v677 = vpop.permute.xlu0 %676
      %678 = vrot.lane.b32.xlu0 %v662, 2
      %v679 = vpop.permute.xlu0 %678
      %vm684 = vcmask 146448
      %685 = vst.msk [vmem:[#allocation2] sm:$0xff] %vm684, %v673
      %686 = vst.msk [vmem:[#allocation2 + $0x8] sm:$0xff] %vm684, %v675
      %687 = vst.msk [vmem:[#allocation2 + $0x10] sm:$0xff] %vm684, %v677
      %688 = vst.msk [vmem:[#allocation2 + $0x18] sm:$0xff] %vm684, %v679
      %693 = vrot.lane.b32.xlu0 %v651, 2
      %v694 = vpop.permute.xlu0 %693
      %695 = vrot.lane.b32.xlu0 %v652, 2
      %v696 = vpop.permute.xlu0 %695
      %697 = vrot.lane.b32.xlu0 %v653, 2
      %v698 = vpop.permute.xlu0 %697
      %699 = vrot.lane.b32.xlu0 %v654, 2
      %v700 = vpop.permute.xlu0 %699
      %705 = vst.msk [vmem:[#allocation3] sm:$0xff] %vm684, %v694
      %706 = vst.msk [vmem:[#allocation3 + $0x8] sm:$0xff] %vm684, %v696
      %707 = vst.msk [vmem:[#allocation3 + $0x10] sm:$0xff] %vm684, %v698
      %708 = vst.msk [vmem:[#allocation3 + $0x18] sm:$0xff] %vm684, %v700
      %p709 = scmp.lt.s32.totalorder %s14, 14
      %s710 = scalar_select %p709, %s14, 14
      %s711 = smul.addr %s710, 4
      %s712 = smul.addr %s711, 8
      %s713 = scalar_lea.vmem %s3, %s712
      // Predicated region
      $region37: #{multi_mdlstm_forward.4} parent=31 // pred_check
        %p714 = pneg %p105
      $region38: #{multi_mdlstm_forward.4} parent=31 // pred_check_branch
        %716 = sbr.rel (%p714) target = $region40
      $region39: #{multi_mdlstm_forward.4} parent=31 // pred_region
        _
      $region40: #{multi_mdlstm_forward.4} parent=31 // pred_fallthru
        _
    $region32: #{multi_mdlstm_forward.4} parent=5 // pred_fallthru
      _
    %p717 = scmp.le.s32.totalorder 2, %s9
    // Predicated region
    $region41: #{multi_mdlstm_forward.4} parent=5 // pred_check
      %p718 = pneg %p717
    $region42: #{multi_mdlstm_forward.4} parent=5 // pred_check_branch
      %720 = sbr.rel (%p718) target = $region44
    $region43: #{multi_mdlstm_forward.4} parent=5 // pred_region
      %s721 = ssub.s32 %s9, 2
      // Predicated region
      $region45: #{multi_mdlstm_forward.4} parent=43 // pred_check
        %p722 = pneg %p111
      $region46: #{multi_mdlstm_forward.4} parent=43 // pred_check_branch
        %724 = sbr.rel (%p722) target = $region48
      $region47: #{multi_mdlstm_forward.4} parent=43 // pred_region
        %p725 = scmp.lt.s32.totalorder %s15, 14
        %s726 = scalar_select %p725, %s15, 14
        %s727 = smul.addr %s726, 4
        %s728 = smul.addr %s727, 8
        %s729 = scalar_lea.vmem %s3, %s728
      $region48: #{multi_mdlstm_forward.4} parent=43 // pred_fallthru
        _
    $region44: #{multi_mdlstm_forward.4} parent=5 // pred_fallthru
      _
  $region6: #{multi_mdlstm_forward.4} parent=0 // loop_footer
    %s13 = sadd.s32 1, %s9
  $region7: #{multi_mdlstm_forward.4} parent=0 // loop_footer_branch
    %8 = sbr.rel target = $region3
  $region8: #{multi_mdlstm_forward.4} parent=0 // loop_exit
    _

</llo_original>
